<compile_context>
chip_gen: v6e
topology: v6e:2x2x1
jax: 0.10.0
libtpu: 0.0.40
codegen_flags: <defaults>
</compile_context>

<pallas_src>
import functools
import math

import jax
import jax.numpy as jnp
from jax.experimental import pallas as pl
from jax.experimental.pallas import tpu as pltpu


def _blp_kernel_resident(x_ref, wlr_ref, wo_ref, o_ref, *, th):
    """Whole hidden dim resident in VMEM: one fused step per row tile."""
    lr = jnp.dot(x_ref[...], wlr_ref[...], preferred_element_type=jnp.float32)
    gated = (lr[:, :th] * lr[:, th:]).astype(wo_ref.dtype)          # bilinear gate
    o_ref[...] = jnp.dot(
        gated, wo_ref[...], preferred_element_type=jnp.float32
    ).astype(o_ref.dtype)


def _blp_kernel_streamed(x_ref, wlr_ref, wo_ref, o_ref, acc_ref, *, th):
    """Hidden dim streamed in blocks: f32 accumulation across grid axis 1."""
    j = pl.program_id(1)
    nj = pl.num_programs(1)

    @pl.when(j == 0)
    def _():
        acc_ref[...] = jnp.zeros_like(acc_ref)

    lr = jnp.dot(x_ref[...], wlr_ref[...], preferred_element_type=jnp.float32)
    gated = (lr[:, :th] * lr[:, th:]).astype(wo_ref.dtype)
    total = acc_ref[...] + jnp.dot(
        gated, wo_ref[...], preferred_element_type=jnp.float32)

    @pl.when(j < nj - 1)
    def _():
        acc_ref[...] = total

    @pl.when(j == nj - 1)
    def _():
        # Final step writes the output directly (no acc round-trip).
        o_ref[...] = total.astype(o_ref.dtype)


def _pick_tm(M, preferred):
    """Row tile: multiple of 8 dividing M; leave >= 2 row blocks (megacore)."""
    if M % 8 != 0:
        return M                     # full dim is always a legal block shape
    limit = preferred
    if M >= 16:
        limit = min(limit, M // 2)   # keep >= 2 blocks on the parallel axis
    for c in (1024, 768, 512, 384, 256, 128, 64, 32, 16, 8):
        if c <= limit and M % c == 0:
            return c
    return 8


def _pick_th(d_hidden, d_model, in_bytes, preferred, weight_budget):
    """Hidden tile: prefer the full hidden dim (weights resident across rows)."""
    def blk_bytes(th):
        # packed [d_model, 2*th] + output proj [th, d_model], double-buffered
        return 2 * 3 * d_model * th * in_bytes

    if blk_bytes(d_hidden) <= weight_budget:
        return d_hidden
    for c in (preferred, 1024, 512, 384, 256, 128):
        if (c < d_hidden and d_hidden % c == 0 and c % 128 == 0
                and blk_bytes(c) <= weight_budget):
            return c
    # Last resort: smallest 128-aligned block, or the full (always legal) dim.
    return 128 if d_hidden % 128 == 0 else d_hidden


def blp_forward(x, w, o_w, *, tile_m=512, tile_h=512, compute_dtype=None,
                weight_vmem_budget=20 * 1024 * 1024):
    """JAX/Pallas equivalent of BLP.forward.

    x   : [..., d_model]
    w   : [d_model, 2*d_hidden]   (== torch Linear(d_model, 2*d_hidden).weight.T)
    o_w : [d_hidden, d_model]     (== torch Linear(d_hidden, d_model).weight.T)
    """
    lead = x.shape[:-1]
    d_model = x.shape[-1]
    two_dh = w.shape[-1]
    assert w.shape[0] == d_model and two_dh % 2 == 0
    d_hidden = two_dh // 2
    assert o_w.shape == (d_hidden, d_model)

    if compute_dtype is None:
        # bf16 matmul operands (f32 accumulation) unless input already narrow.
        compute_dtype = jnp.bfloat16 if x.dtype == jnp.float32 else x.dtype
    in_bytes = jnp.dtype(compute_dtype).itemsize
    out_bytes = jnp.dtype(x.dtype).itemsize

    M = math.prod(lead) if lead else 1
    x2d = x.reshape(M, d_model).astype(compute_dtype)

    tm = _pick_tm(M, tile_m)
    th = _pick_th(d_hidden, d_model, in_bytes, tile_h, weight_vmem_budget)
    num_h_blocks = d_hidden // th

    # Pack left/right hidden blocks adjacently so one DMA stream and one MXU
    # dot per grid step cover both projections: block j holds [Wl_j | Wr_j].
    if num_h_blocks == 1:
        w_pk = w.astype(compute_dtype)
    else:
        w_pk = jnp.concatenate(
            [w[:, :d_hidden].reshape(d_model, num_h_blocks, th),
             w[:, d_hidden:].reshape(d_model, num_h_blocks, th)], axis=-1,
        ).reshape(d_model, 2 * d_hidden).astype(compute_dtype)
    o_w_c = o_w.astype(compute_dtype)

    # Explicit VMEM budget from the chosen blocks (double-buffered streams).
    vmem_need = (2 * 3 * d_model * th * in_bytes      # w block + o_w block, x2 buffers
                 + 2 * tm * d_model * in_bytes        # x tile, x2 buffers
                 + 2 * tm * d_model * out_bytes       # out tile, x2 buffers
                 + (tm * d_model * 4 if num_h_blocks > 1 else 0))   # f32 acc
    vmem_limit = max(int(vmem_need * 1.5) + (2 << 20), 32 << 20)
    vmem_limit = min(vmem_limit, 100 << 20)

    if num_h_blocks == 1:
        kernel = functools.partial(_blp_kernel_resident, th=th)
        grid = (M // tm,)
        in_specs = [
            pl.BlockSpec((tm, d_model), lambda i: (i, 0)),
            pl.BlockSpec((d_model, 2 * th), lambda i: (0, 0)),   # DMA'd once, resident
            pl.BlockSpec((th, d_model), lambda i: (0, 0)),       # DMA'd once, resident
        ]
        out_specs = pl.BlockSpec((tm, d_model), lambda i: (i, 0))
        scratch = []
        dims = ("parallel",)
    else:
        kernel = functools.partial(_blp_kernel_streamed, th=th)
        grid = (M // tm, num_h_blocks)
        in_specs = [
            pl.BlockSpec((tm, d_model), lambda i, j: (i, 0)),
            pl.BlockSpec((d_model, 2 * th), lambda i, j: (0, j)),
            pl.BlockSpec((th, d_model), lambda i, j: (j, 0)),
        ]
        out_specs = pl.BlockSpec((tm, d_model), lambda i, j: (i, 0))
        scratch = [pltpu.VMEM((tm, d_model), jnp.float32)]
        dims = ("parallel", "arbitrary")

    out2d = pl.pallas_call(
        kernel,
        out_shape=jax.ShapeDtypeStruct((M, d_model), x.dtype),
        grid=grid,
        in_specs=in_specs,
        out_specs=out_specs,
        scratch_shapes=scratch,
        compiler_params=pltpu.CompilerParams(
            dimension_semantics=dims,
            vmem_limit_bytes=vmem_limit),
    )(x2d, w_pk, o_w_c)

    return out2d.reshape(*lead, d_model)


def _blp_reference(x, w, o_w, compute_dtype):
    """Pure-JAX reference mirroring the kernel's compute dtype."""
    cd = compute_dtype
    d_hidden = w.shape[-1] // 2
    h = jnp.dot(x.astype(cd), w.astype(cd), preferred_element_type=jnp.float32)
    gated = (h[..., :d_hidden] * h[..., d_hidden:]).astype(cd)
    return jnp.dot(gated, o_w.astype(cd),
                   preferred_element_type=jnp.float32).astype(x.dtype)


if __name__ == "__main__":
    # Config defaults: d_model = 4*64 = 256, d_hidden = 4*4*64 = 1024.
    batch, seq, d_model, d_hidden = 2, 8, 256, 1024

    key = jax.random.PRNGKey(0)
    kx, kw, ko = jax.random.split(key, 3)

    x = jax.random.normal(kx, (batch, seq, d_model), dtype=jnp.float32)
    # Linear-style init (~1/sqrt(fan_in)) keeps values well-scaled.
    w = jax.random.normal(kw, (d_model, 2 * d_hidden), dtype=jnp.float32) / math.sqrt(d_model)
    o_w = jax.random.normal(ko, (d_hidden, d_model), dtype=jnp.float32) / math.sqrt(d_hidden)

    y = jax.block_until_ready(blp_forward(x, w, o_w))
    assert y.shape == x.shape and y.dtype == x.dtype

    y_ref = jax.block_until_ready(_blp_reference(x, w, o_w, jnp.bfloat16))
    err = float(jnp.max(jnp.abs(y - y_ref)))
    scale = float(jnp.max(jnp.abs(y_ref))) + 1e-6
    assert err / scale < 1e-2, f"mismatch: rel err {err / scale}"

    print("KERNEL_OK")
</pallas_src>

<mosaic_0001>
module attributes {stable_mosaic.version = 11 : i64} {
  func.func @_blp_kernel_resident(%arg0: i32, %arg1: memref<8x256xbf16, #tpu.memory_space<vmem>>, %arg2: memref<256x2048xbf16, #tpu.memory_space<vmem>>, %arg3: memref<1024x256xbf16, #tpu.memory_space<vmem>>, %arg4: memref<8x256xf32, #tpu.memory_space<vmem>>) attributes {dimension_semantics = [#tpu.dimension_semantics<parallel>], iteration_bounds = array<i64: 2>, scalar_prefetch = 0 : i64, scratch_operands = 0 : i64, tpu.core_type = #tpu.core_type<tc>, window_params = [{transform_indices = @transform_0, window_bounds = array<i64: 8, 256>}, {pipeline_mode = #tpu.pipeline_mode<synchronous>, transform_indices = @transform_1, window_bounds = array<i64: 256, 2048>}, {pipeline_mode = #tpu.pipeline_mode<synchronous>, transform_indices = @transform_2, window_bounds = array<i64: 1024, 256>}, {transform_indices = @transform_3, window_bounds = array<i64: 8, 256>}]} {
    %c0 = arith.constant 0 : index
    %c0_0 = arith.constant 0 : index
    %0 = vector.load %arg1[%c0, %c0_0] : memref<8x256xbf16, #tpu.memory_space<vmem>>, vector<8x256xbf16>
    %c0_1 = arith.constant 0 : index
    %c0_2 = arith.constant 0 : index
    %1 = vector.load %arg2[%c0_1, %c0_2] : memref<256x2048xbf16, #tpu.memory_space<vmem>>, vector<256x2048xbf16>
    %cst = arith.constant dense<0.000000e+00> : vector<8x2048xf32>
    %2 = tpu.matmul %0, %1, %cst {dimension_numbers = #tpu.dot_dimension_numbers<[1], [0], [0], [1], [0, 0, 1, 1], [], []>} : vector<8x256xbf16>, vector<256x2048xbf16>, vector<8x2048xf32> -> vector<8x2048xf32>
    %3 = vector.extract_strided_slice %2 {offsets = [0, 0], sizes = [8, 1024], strides = [1, 1]} : vector<8x2048xf32> to vector<8x1024xf32>
    %4 = vector.extract_strided_slice %2 {offsets = [0, 1024], sizes = [8, 1024], strides = [1, 1]} : vector<8x2048xf32> to vector<8x1024xf32>
    %5 = arith.mulf %3, %4 : vector<8x1024xf32>
    %6 = arith.truncf %5 : vector<8x1024xf32> to vector<8x1024xbf16>
    %c0_3 = arith.constant 0 : index
    %c0_4 = arith.constant 0 : index
    %7 = vector.load %arg3[%c0_3, %c0_4] : memref<1024x256xbf16, #tpu.memory_space<vmem>>, vector<1024x256xbf16>
    %cst_5 = arith.constant dense<0.000000e+00> : vector<8x256xf32>
    %8 = tpu.matmul %6, %7, %cst_5 {dimension_numbers = #tpu.dot_dimension_numbers<[1], [0], [0], [1], [0, 0, 1, 1], [], []>} : vector<8x1024xbf16>, vector<1024x256xbf16>, vector<8x256xf32> -> vector<8x256xf32>
    %c0_6 = arith.constant 0 : index
    %c0_7 = arith.constant 0 : index
    %9 = vector.load %arg4[%c0_6, %c0_7] : memref<8x256xf32, #tpu.memory_space<vmem>>, vector<8x256xf32>
    tpu.vector_store %arg4[%c0_6, %c0_7], %8 {strides = array<i32>} : memref<8x256xf32, #tpu.memory_space<vmem>>, vector<8x256xf32>,
    return
  }
  func.func @transform_0(%arg0: i32) -> (i32, i32) {
    %c0_i32 = arith.constant 0 : i32
    %c0_i32_0 = arith.constant 0 : i32
    return %arg0, %c0_i32 : i32, i32
  }
  func.func @transform_1(%arg0: i32) -> (i32, i32) {
    %c0_i32 = arith.constant 0 : i32
    %c0_i32_0 = arith.constant 0 : i32
    %c0_i32_1 = arith.constant 0 : i32
    return %c0_i32, %c0_i32_0 : i32, i32
  }
  func.func @transform_2(%arg0: i32) -> (i32, i32) {
    %c0_i32 = arith.constant 0 : i32
    %c0_i32_0 = arith.constant 0 : i32
    %c0_i32_1 = arith.constant 0 : i32
    return %c0_i32, %c0_i32_0 : i32, i32
  }
  func.func @transform_3(%arg0: i32) -> (i32, i32) {
    %c0_i32 = arith.constant 0 : i32
    %c0_i32_0 = arith.constant 0 : i32
    return %arg0, %c0_i32 : i32, i32
  }
}

</mosaic_0001>

<llo_original>
// kernel: tpu_custom_call.1
$region0: #{tpu_custom_call.1}
  #allocation0 [shape = 'u32[]', space=smem, size = 0x4, offset = 0x4, fixed_abs, tag = 'smem constant byte address 0x4 - core index']
  #allocation1 [shape = 'u32[144,128]{1,0:T(1,128)}', space=vmem, size = 0x12000, scoped, tag = 'internal scratch']
  %s0 = inlined_call_operand.hbm [shape: bf16[16,256], index: 0, kind: input, shape index: {}]
  %s1 = inlined_call_operand.hbm [shape: bf16[256,2048], index: 1, kind: input, shape index: {}]
  %s2 = inlined_call_operand.hbm [shape: bf16[1024,256], index: 2, kind: input, shape index: {}]
  %s3 = inlined_call_operand.hbm [shape: f32[16,256], index: 3, kind: output, shape index: {}]
  %s4 = sld [smem:[#allocation0]]
  $region57: #{tpu_custom_call.1} parent=0
    _
  %s6 = ssub.s32 1, %s4
  %s7 = scalar_select 0, %s6, %s4
  $region1: #{tpu_custom_call.1} parent=0
    #allocation2 [shape = 'u8[8192]{0}', space=vmem, size = 0x2000, scoped, tag = 'input window, operand 0']
    #allocation3 [shape = 's32[2]{0}', space=sflag, size = 0x8, scoped, tag = 'scoped memory for tpu_custom_call.1']
    #allocation4 [shape = 's32[2]{0}', space=sflag, size = 0x8, scoped, tag = 'scoped memory for tpu_custom_call.1']
    #allocation5 [shape = 'u8[1048576]{0}', space=vmem, size = 0x100000, scoped, tag = 'input window, operand 1, single buffered']
    #allocation6 [shape = 's32[1]{0}', space=sflag, size = 0x4, scoped, tag = 'scoped memory for tpu_custom_call.1']
    #allocation7 [shape = 'u8[524288]{0}', space=vmem, size = 0x80000, scoped, tag = 'input window, operand 2, single buffered']
    #allocation8 [shape = 'u8[16384]{0}', space=vmem, size = 0x4000, scoped, tag = 'output window, operand 0']
    %8 = vsyncpa [#allocation3], 0
    %s9 = scalar_lea.sflag [#allocation3], 1
    %10 = vsyncpa %s9, 0
    %11 = vsyncpa [#allocation6], 0
    %12 = vsyncpa [#allocation4], 0
    %s13 = scalar_lea.sflag [#allocation4], 1
    %14 = vsyncpa %s13, 0
    loop: start=0, step=1, limit=4
    $region2: #{tpu_custom_call.1} parent=1 // loop_pre_header
      _
    $region3: #{tpu_custom_call.1} parent=1 // loop_header
      %s16 = sphi 0, %s20
      %p17 = scmp.ge.s32.totalorder %s16, 4
      %s26 = sphi 0, %s28
      %s29 = sphi 0, %s26
      %s30 = sphi 0, %s29
      %s46 = sphi 0, %s30
      %s50 = sphi 0, %s50
      %s52 = sphi 0, %s50
      %s53 = sphi 0, %s52
      %s67 = sphi 0, %s53
      %s71 = sphi 0, %s71
      %s73 = sphi 0, %s71
      %s74 = sphi 0, %s73
      %s88 = sphi 0, %s74
      %s94 = sphi 0, %s96
      %s97 = sphi 0, %s94
      %s98 = sphi 0, %s97
      %s114 = sphi 0, %s98
    $region4: #{tpu_custom_call.1} parent=1 // loop_header_branch
      %19 = sbr.rel (%p17) target = $region8
    $region5: #{tpu_custom_call.1} parent=1 // loop_body
      %s21 = ssub.s32 %s16, 1
      %s22 = ssub.s32 %s16, 2
      %s23 = sadd.s32 %s16, 1
      %s24 = ssub.s32 %s16, %s23
      %p25 = scmp.eq.s32.totalorder %s24, 0
      %s27 = sadd.s32 %s26, 1
      %s28 = scalar_select %p25, %s26, %s27
      %p31 = pneg %p25
      %p32 = scmp.eq.s32.totalorder %s16, 1
      %p33 = por %p31, %p32
      %p34 = scmp.ne.s32.totalorder %s26, %s29
      %p35 = scmp.eq.s32.totalorder %s16, 0
      %p36 = por %p34, %p35
      %p37 = scmp.ne.s32.totalorder %s26, %s29
      %p38 = scmp.eq.s32.totalorder %s21, 1
      %p39 = por %p37, %p38
      %p40 = scmp.ne.s32.totalorder %s29, %s30
      %p41 = scmp.eq.s32.totalorder %s21, 0
      %p42 = por %p40, %p41
      %p43 = scmp.ne.s32.totalorder %s29, %s30
      %p44 = scmp.eq.s32.totalorder %s22, 1
      %p45 = por %p43, %p44
      %p47 = scmp.ne.s32.totalorder %s30, %s46
      %p48 = scmp.eq.s32.totalorder %s22, 0
      %p49 = por %p47, %p48
      %s51 = sadd.s32 %s50, 1
      %p54 = scmp.eq.s32.totalorder %s16, 1
      %p55 = scmp.ne.s32.totalorder %s50, %s52
      %p56 = scmp.eq.s32.totalorder %s16, 0
      %p57 = por %p55, %p56
      %p58 = scmp.ne.s32.totalorder %s50, %s52
      %p59 = scmp.eq.s32.totalorder %s21, 1
      %p60 = por %p58, %p59
      %p61 = scmp.ne.s32.totalorder %s52, %s53
      %p62 = scmp.eq.s32.totalorder %s21, 0
      %p63 = por %p61, %p62
      %p64 = scmp.ne.s32.totalorder %s52, %s53
      %p65 = scmp.eq.s32.totalorder %s22, 1
      %p66 = por %p64, %p65
      %p68 = scmp.ne.s32.totalorder %s53, %s67
      %p69 = scmp.eq.s32.totalorder %s22, 0
      %p70 = por %p68, %p69
      %s72 = sadd.s32 %s71, 1
      %p75 = scmp.eq.s32.totalorder %s16, 1
      %p76 = scmp.ne.s32.totalorder %s71, %s73
      %p77 = scmp.eq.s32.totalorder %s16, 0
      %p78 = por %p76, %p77
      %p79 = scmp.ne.s32.totalorder %s71, %s73
      %p80 = scmp.eq.s32.totalorder %s21, 1
      %p81 = por %p79, %p80
      %p82 = scmp.ne.s32.totalorder %s73, %s74
      %p83 = scmp.eq.s32.totalorder %s21, 0
      %p84 = por %p82, %p83
      %p85 = scmp.ne.s32.totalorder %s73, %s74
      %p86 = scmp.eq.s32.totalorder %s22, 1
      %p87 = por %p85, %p86
      %p89 = scmp.ne.s32.totalorder %s74, %s88
      %p90 = scmp.eq.s32.totalorder %s22, 0
      %p91 = por %p89, %p90
      %s92 = ssub.s32 %s16, %s23
      %p93 = scmp.eq.s32.totalorder %s92, 0
      %s95 = sadd.s32 %s94, 1
      %s96 = scalar_select %p93, %s94, %s95
      %p99 = pneg %p93
      %p100 = scmp.eq.s32.totalorder %s16, 1
      %p101 = por %p99, %p100
      %p102 = scmp.ne.s32.totalorder %s94, %s97
      %p103 = scmp.eq.s32.totalorder %s16, 0
      %p104 = por %p102, %p103
      %p105 = scmp.ne.s32.totalorder %s94, %s97
      %p106 = scmp.eq.s32.totalorder %s21, 1
      %p107 = por %p105, %p106
      %p108 = scmp.ne.s32.totalorder %s97, %s98
      %p109 = scmp.eq.s32.totalorder %s21, 0
      %p110 = por %p108, %p109
      %p111 = scmp.ne.s32.totalorder %s97, %s98
      %p112 = scmp.eq.s32.totalorder %s22, 1
      %p113 = por %p111, %p112
      %p115 = scmp.ne.s32.totalorder %s98, %s114
      %p116 = scmp.eq.s32.totalorder %s22, 0
      %p117 = por %p115, %p116
      %p118 = scmp.le.s32.totalorder 1, %s16
      %p119 = scmp.lt.s32.totalorder %s16, 3
      %p120 = pnand %p118, %p119
      %p121 = pneg %p120
      // Predicated region
      $region9: #{tpu_custom_call.1} parent=5 // pred_check
        _
      $region10: #{tpu_custom_call.1} parent=5 // pred_check_branch
        %123 = sbr.rel (%p120) target = $region12
      $region11: #{tpu_custom_call.1} parent=5 // pred_region
        %s124 = ssub.s32 %s16, 1
        // Predicated region
        $region13: #{tpu_custom_call.1} parent=11 // pred_check
          %p125 = pneg %p63
        $region14: #{tpu_custom_call.1} parent=11 // pred_check_branch
          %127 = sbr.rel (%p125) target = $region16
        $region15: #{tpu_custom_call.1} parent=11 // pred_region
          %s129 = ssub.s32 32768, 32768
          %130 = vsyncadd [#allocation6], %s129
          %s131 = sshll.u32 [#allocation5], 4
          %s132 = int_to_ptr.vmem [resolvable:$true] %s131
          %137 = dma.hbm_to_vmem [thread:$0]  %s1, 32768, %s132, [#allocation6], 1024, 1024, 64
        $region16: #{tpu_custom_call.1} parent=11 // pred_fallthru
          _
        // Predicated region
        $region17: #{tpu_custom_call.1} parent=11 // pred_check
          %p138 = pneg %p84
        $region18: #{tpu_custom_call.1} parent=11 // pred_check_branch
          %140 = sbr.rel (%p138) target = $region20
        $region19: #{tpu_custom_call.1} parent=11 // pred_region
          %s142 = ssub.s32 16384, 16384
          %143 = vsyncadd [#allocation6], %s142
          %s144 = sshll.u32 [#allocation7], 4
          %s145 = int_to_ptr.vmem [resolvable:$true] %s144
          %150 = dma.hbm_to_vmem [thread:$0]  %s2, 16384, %s145, [#allocation6], 128, 128, 8
        $region20: #{tpu_custom_call.1} parent=11 // pred_fallthru
          _
      $region12: #{tpu_custom_call.1} parent=5 // pred_fallthru
        _
      %p151 = scmp.lt.s32.totalorder %s16, 2
      // Predicated region
      $region21: #{tpu_custom_call.1} parent=5 // pred_check
        %p152 = pneg %p151
      $region22: #{tpu_custom_call.1} parent=5 // pred_check_branch
        %154 = sbr.rel (%p152) target = $region24
      $region23: #{tpu_custom_call.1} parent=5 // pred_region
        // Predicated region
        $region25: #{tpu_custom_call.1} parent=23 // pred_check
          %p155 = pneg %p36
        $region26: #{tpu_custom_call.1} parent=23 // pred_check_branch
          %157 = sbr.rel (%p155) target = $region28
        $region27: #{tpu_custom_call.1} parent=23 // pred_region
          %s158 = sand.u32 %s26, 1
          %s159 = scalar_lea.sflag [#allocation3], %s158
          %s160 = sand.u32 %s26, 1
          %s161 = smul.addr %s160, 8
          %s162 = scalar_lea.vmem [#allocation2], %s161
          %s164 = ssub.s32 128, 128
          %165 = vsyncadd %s159, %s164
          %s166 = smul.addr %s16, 2
          %s167 = smul.addr %s166, 64
          %s168 = scalar_lea.hbm %s0, %s167
          %s170 = sshll.u32 %s162, 4
          %s171 = int_to_ptr.vmem [resolvable:$true] %s170
          %173 = dma.hbm_to_vmem [thread:$0]  %s168, 128, %s171, %s159
        $region28: #{tpu_custom_call.1} parent=23 // pred_fallthru
          _
      $region24: #{tpu_custom_call.1} parent=5 // pred_fallthru
        _
      %p174 = scmp.le.s32.totalorder 1, %s16
      %p175 = scmp.lt.s32.totalorder %s16, 3
      %p176 = pnand %p174, %p175
      %p177 = pneg %p176
      // Predicated region
      $region29: #{tpu_custom_call.1} parent=5 // pred_check
        _
      $region30: #{tpu_custom_call.1} parent=5 // pred_check_branch
        %179 = sbr.rel (%p176) target = $region32
      $region31: #{tpu_custom_call.1} parent=5 // pred_region
        %s180 = ssub.s32 %s16, 1
        %s181 = sand.u32 %s29, 1
        %s182 = scalar_lea.sflag [#allocation3], %s181
        %s183 = sand.u32 %s29, 1
        %s184 = smul.addr %s183, 8
        %s185 = scalar_lea.vmem [#allocation2], %s184
        // Predicated region
        $region33: #{tpu_custom_call.1} parent=31 // pred_check
          %p186 = pneg %p42
        $region34: #{tpu_custom_call.1} parent=31 // pred_check_branch
          %188 = sbr.rel (%p186) target = $region36
        $region35: #{tpu_custom_call.1} parent=31 // pred_region
          %189 = dma.done %s182, 128
        $region36: #{tpu_custom_call.1} parent=31 // pred_fallthru
          _
        // Predicated region
        $region37: #{tpu_custom_call.1} parent=31 // pred_check
          %p190 = pneg %p63
        $region38: #{tpu_custom_call.1} parent=31 // pred_check_branch
          %192 = sbr.rel (%p190) target = $region40
        $region39: #{tpu_custom_call.1} parent=31 // pred_region
          %193 = dma.done [#allocation6], 32768
        $region40: #{tpu_custom_call.1} parent=31 // pred_fallthru
          _
        // Predicated region
        $region41: #{tpu_custom_call.1} parent=31 // pred_check
          %p194 = pneg %p84
        $region42: #{tpu_custom_call.1} parent=31 // pred_check_branch
          %196 = sbr.rel (%p194) target = $region44
        $region43: #{tpu_custom_call.1} parent=31 // pred_region
          %197 = dma.done [#allocation6], 16384
        $region44: #{tpu_custom_call.1} parent=31 // pred_fallthru
          _
        %s198 = sand.u32 %s29, 1
        %s199 = scalar_lea.sflag [#allocation3], %s198
        %s200 = sand.u32 %s29, 1
        %s201 = smul.addr %s200, 8
        %s202 = scalar_lea.vmem [#allocation2], %s201
        %p203 = pneg %p42
        %p204 = pneg %p39
        %p205 = pneg %p63
        %p206 = pneg %p60
        %p207 = pneg %p84
        %p208 = pneg %p81
        %p209 = pneg %p110
        %p210 = pneg %p107
        %s211 = sand.u32 %s97, 1
        %s212 = scalar_lea.sflag [#allocation4], %s211
        %s213 = sand.u32 %s97, 1
        %s214 = smul.addr %s213, 16
        %s215 = scalar_lea.vmem [#allocation8], %s214
        %v216 = vld [vmem:[%s185] sm:$0xff]
        %v217 = vld [vmem:[#allocation5] sm:$0xff]
        %v218 = vld [vmem:[#allocation5 + $0x8] sm:$0xff]
        %v219 = vld [vmem:[#allocation5 + $0x10] sm:$0xff]
        %v220 = vld [vmem:[#allocation5 + $0x18] sm:$0xff]
        %v221 = vld [vmem:[#allocation5 + $0x20] sm:$0xff]
        %v222 = vld [vmem:[#allocation5 + $0x28] sm:$0xff]
        %v223 = vld [vmem:[#allocation5 + $0x30] sm:$0xff]
        %v224 = vld [vmem:[#allocation5 + $0x38] sm:$0xff]
        %v225 = vld [vmem:[#allocation5 + $0x40] sm:$0xff]
        %v226 = vld [vmem:[#allocation5 + $0x48] sm:$0xff]
        %v227 = vld [vmem:[#allocation5 + $0x50] sm:$0xff]
        %v228 = vld [vmem:[#allocation5 + $0x58] sm:$0xff]
        %v229 = vld [vmem:[#allocation5 + $0x60] sm:$0xff]
        %v230 = vld [vmem:[#allocation5 + $0x68] sm:$0xff]
        %v231 = vld [vmem:[#allocation5 + $0x70] sm:$0xff]
        %v232 = vld [vmem:[#allocation5 + $0x78] sm:$0xff]
        %v233 = vld [vmem:[#allocation5 + $0x80] sm:$0xff]
        %v234 = vld [vmem:[#allocation5 + $0x88] sm:$0xff]
        %v235 = vld [vmem:[#allocation5 + $0x90] sm:$0xff]
        %v236 = vld [vmem:[#allocation5 + $0x98] sm:$0xff]
        %v237 = vld [vmem:[#allocation5 + $0xa0] sm:$0xff]
        %v238 = vld [vmem:[#allocation5 + $0xa8] sm:$0xff]
        %v239 = vld [vmem:[#allocation5 + $0xb0] sm:$0xff]
        %v240 = vld [vmem:[#allocation5 + $0xb8] sm:$0xff]
        %v241 = vld [vmem:[#allocation5 + $0xc0] sm:$0xff]
        %v242 = vld [vmem:[#allocation5 + $0xc8] sm:$0xff]
        %v243 = vld [vmem:[#allocation5 + $0xd0] sm:$0xff]
        %v244 = vld [vmem:[#allocation5 + $0xd8] sm:$0xff]
        %v245 = vld [vmem:[#allocation5 + $0xe0] sm:$0xff]
        %v246 = vld [vmem:[#allocation5 + $0xe8] sm:$0xff]
        %v247 = vld [vmem:[#allocation5 + $0xf0] sm:$0xff]
        %v248 = vld [vmem:[#allocation5 + $0xf8] sm:$0xff]
        %v249 = vld [vmem:[#allocation5 + $0x100] sm:$0xff]
        %v250 = vld [vmem:[#allocation5 + $0x108] sm:$0xff]
        %v251 = vld [vmem:[#allocation5 + $0x110] sm:$0xff]
        %v252 = vld [vmem:[#allocation5 + $0x118] sm:$0xff]
        %v253 = vld [vmem:[#allocation5 + $0x120] sm:$0xff]
        %v254 = vld [vmem:[#allocation5 + $0x128] sm:$0xff]
        %v255 = vld [vmem:[#allocation5 + $0x130] sm:$0xff]
        %v256 = vld [vmem:[#allocation5 + $0x138] sm:$0xff]
        %v257 = vld [vmem:[#allocation5 + $0x140] sm:$0xff]
        %v258 = vld [vmem:[#allocation5 + $0x148] sm:$0xff]
        %v259 = vld [vmem:[#allocation5 + $0x150] sm:$0xff]
        %v260 = vld [vmem:[#allocation5 + $0x158] sm:$0xff]
        %v261 = vld [vmem:[#allocation5 + $0x160] sm:$0xff]
        %v262 = vld [vmem:[#allocation5 + $0x168] sm:$0xff]
        %v263 = vld [vmem:[#allocation5 + $0x170] sm:$0xff]
        %v264 = vld [vmem:[#allocation5 + $0x178] sm:$0xff]
        %v265 = vld [vmem:[#allocation5 + $0x180] sm:$0xff]
        %v266 = vld [vmem:[#allocation5 + $0x188] sm:$0xff]
        %v267 = vld [vmem:[#allocation5 + $0x190] sm:$0xff]
        %v268 = vld [vmem:[#allocation5 + $0x198] sm:$0xff]
        %v269 = vld [vmem:[#allocation5 + $0x1a0] sm:$0xff]
        %v270 = vld [vmem:[#allocation5 + $0x1a8] sm:$0xff]
        %v271 = vld [vmem:[#allocation5 + $0x1b0] sm:$0xff]
        %v272 = vld [vmem:[#allocation5 + $0x1b8] sm:$0xff]
        %v273 = vld [vmem:[#allocation5 + $0x1c0] sm:$0xff]
        %v274 = vld [vmem:[#allocation5 + $0x1c8] sm:$0xff]
        %v275 = vld [vmem:[#allocation5 + $0x1d0] sm:$0xff]
        %v276 = vld [vmem:[#allocation5 + $0x1d8] sm:$0xff]
        %v277 = vld [vmem:[#allocation5 + $0x1e0] sm:$0xff]
        %v278 = vld [vmem:[#allocation5 + $0x1e8] sm:$0xff]
        %v279 = vld [vmem:[#allocation5 + $0x1f0] sm:$0xff]
        %v280 = vld [vmem:[#allocation5 + $0x1f8] sm:$0xff]
        %v281 = vld [vmem:[#allocation5 + $0x200] sm:$0xff]
        %v282 = vld [vmem:[#allocation5 + $0x208] sm:$0xff]
        %v283 = vld [vmem:[#allocation5 + $0x210] sm:$0xff]
        %v284 = vld [vmem:[#allocation5 + $0x218] sm:$0xff]
        %v285 = vld [vmem:[#allocation5 + $0x220] sm:$0xff]
        %v286 = vld [vmem:[#allocation5 + $0x228] sm:$0xff]
        %v287 = vld [vmem:[#allocation5 + $0x230] sm:$0xff]
        %v288 = vld [vmem:[#allocation5 + $0x238] sm:$0xff]
        %v289 = vld [vmem:[#allocation5 + $0x240] sm:$0xff]
        %v290 = vld [vmem:[#allocation5 + $0x248] sm:$0xff]
        %v291 = vld [vmem:[#allocation5 + $0x250] sm:$0xff]
        %v292 = vld [vmem:[#allocation5 + $0x258] sm:$0xff]
        %v293 = vld [vmem:[#allocation5 + $0x260] sm:$0xff]
        %v294 = vld [vmem:[#allocation5 + $0x268] sm:$0xff]
        %v295 = vld [vmem:[#allocation5 + $0x270] sm:$0xff]
        %v296 = vld [vmem:[#allocation5 + $0x278] sm:$0xff]
        %v297 = vld [vmem:[#allocation5 + $0x280] sm:$0xff]
        %v298 = vld [vmem:[#allocation5 + $0x288] sm:$0xff]
        %v299 = vld [vmem:[#allocation5 + $0x290] sm:$0xff]
        %v300 = vld [vmem:[#allocation5 + $0x298] sm:$0xff]
        %v301 = vld [vmem:[#allocation5 + $0x2a0] sm:$0xff]
        %v302 = vld [vmem:[#allocation5 + $0x2a8] sm:$0xff]
        %v303 = vld [vmem:[#allocation5 + $0x2b0] sm:$0xff]
        %v304 = vld [vmem:[#allocation5 + $0x2b8] sm:$0xff]
        %v305 = vld [vmem:[#allocation5 + $0x2c0] sm:$0xff]
        %v306 = vld [vmem:[#allocation5 + $0x2c8] sm:$0xff]
        %v307 = vld [vmem:[#allocation5 + $0x2d0] sm:$0xff]
        %v308 = vld [vmem:[#allocation5 + $0x2d8] sm:$0xff]
        %v309 = vld [vmem:[#allocation5 + $0x2e0] sm:$0xff]
        %v310 = vld [vmem:[#allocation5 + $0x2e8] sm:$0xff]
        %v311 = vld [vmem:[#allocation5 + $0x2f0] sm:$0xff]
        %v312 = vld [vmem:[#allocation5 + $0x2f8] sm:$0xff]
        %v313 = vld [vmem:[#allocation5 + $0x300] sm:$0xff]
        %v314 = vld [vmem:[#allocation5 + $0x308] sm:$0xff]
        %v315 = vld [vmem:[#allocation5 + $0x310] sm:$0xff]
        %v316 = vld [vmem:[#allocation5 + $0x318] sm:$0xff]
        %v317 = vld [vmem:[#allocation5 + $0x320] sm:$0xff]
        %v318 = vld [vmem:[#allocation5 + $0x328] sm:$0xff]
        %v319 = vld [vmem:[#allocation5 + $0x330] sm:$0xff]
        %v320 = vld [vmem:[#allocation5 + $0x338] sm:$0xff]
        %v321 = vld [vmem:[#allocation5 + $0x340] sm:$0xff]
        %v322 = vld [vmem:[#allocation5 + $0x348] sm:$0xff]
        %v323 = vld [vmem:[#allocation5 + $0x350] sm:$0xff]
        %v324 = vld [vmem:[#allocation5 + $0x358] sm:$0xff]
        %v325 = vld [vmem:[#allocation5 + $0x360] sm:$0xff]
        %v326 = vld [vmem:[#allocation5 + $0x368] sm:$0xff]
        %v327 = vld [vmem:[#allocation5 + $0x370] sm:$0xff]
        %v328 = vld [vmem:[#allocation5 + $0x378] sm:$0xff]
        %v329 = vld [vmem:[#allocation5 + $0x380] sm:$0xff]
        %v330 = vld [vmem:[#allocation5 + $0x388] sm:$0xff]
        %v331 = vld [vmem:[#allocation5 + $0x390] sm:$0xff]
        %v332 = vld [vmem:[#allocation5 + $0x398] sm:$0xff]
        %v333 = vld [vmem:[#allocation5 + $0x3a0] sm:$0xff]
        %v334 = vld [vmem:[#allocation5 + $0x3a8] sm:$0xff]
        %v335 = vld [vmem:[#allocation5 + $0x3b0] sm:$0xff]
        %v336 = vld [vmem:[#allocation5 + $0x3b8] sm:$0xff]
        %v337 = vld [vmem:[#allocation5 + $0x3c0] sm:$0xff]
        %v338 = vld [vmem:[#allocation5 + $0x3c8] sm:$0xff]
        %v339 = vld [vmem:[#allocation5 + $0x3d0] sm:$0xff]
        %v340 = vld [vmem:[#allocation5 + $0x3d8] sm:$0xff]
        %v341 = vld [vmem:[#allocation5 + $0x3e0] sm:$0xff]
        %v342 = vld [vmem:[#allocation5 + $0x3e8] sm:$0xff]
        %v343 = vld [vmem:[#allocation5 + $0x3f0] sm:$0xff]
        %v344 = vld [vmem:[#allocation5 + $0x3f8] sm:$0xff]
        %v345 = vld [vmem:[#allocation5 + $0x400] sm:$0xff]
        %v346 = vld [vmem:[#allocation5 + $0x408] sm:$0xff]
        %v347 = vld [vmem:[#allocation5 + $0x410] sm:$0xff]
        %v348 = vld [vmem:[#allocation5 + $0x418] sm:$0xff]
        %v349 = vld [vmem:[#allocation5 + $0x420] sm:$0xff]
        %v350 = vld [vmem:[#allocation5 + $0x428] sm:$0xff]
        %v351 = vld [vmem:[#allocation5 + $0x430] sm:$0xff]
        %v352 = vld [vmem:[#allocation5 + $0x438] sm:$0xff]
        %v353 = vld [vmem:[#allocation5 + $0x440] sm:$0xff]
        %v354 = vld [vmem:[#allocation5 + $0x448] sm:$0xff]
        %v355 = vld [vmem:[#allocation5 + $0x450] sm:$0xff]
        %v356 = vld [vmem:[#allocation5 + $0x458] sm:$0xff]
        %v357 = vld [vmem:[#allocation5 + $0x460] sm:$0xff]
        %v358 = vld [vmem:[#allocation5 + $0x468] sm:$0xff]
        %v359 = vld [vmem:[#allocation5 + $0x470] sm:$0xff]
        %v360 = vld [vmem:[#allocation5 + $0x478] sm:$0xff]
        %v361 = vld [vmem:[#allocation5 + $0x480] sm:$0xff]
        %v362 = vld [vmem:[#allocation5 + $0x488] sm:$0xff]
        %v363 = vld [vmem:[#allocation5 + $0x490] sm:$0xff]
        %v364 = vld [vmem:[#allocation5 + $0x498] sm:$0xff]
        %v365 = vld [vmem:[#allocation5 + $0x4a0] sm:$0xff]
        %v366 = vld [vmem:[#allocation5 + $0x4a8] sm:$0xff]
        %v367 = vld [vmem:[#allocation5 + $0x4b0] sm:$0xff]
        %v368 = vld [vmem:[#allocation5 + $0x4b8] sm:$0xff]
        %v369 = vld [vmem:[#allocation5 + $0x4c0] sm:$0xff]
        %v370 = vld [vmem:[#allocation5 + $0x4c8] sm:$0xff]
        %v371 = vld [vmem:[#allocation5 + $0x4d0] sm:$0xff]
        %v372 = vld [vmem:[#allocation5 + $0x4d8] sm:$0xff]
        %v373 = vld [vmem:[#allocation5 + $0x4e0] sm:$0xff]
        %v374 = vld [vmem:[#allocation5 + $0x4e8] sm:$0xff]
        %v375 = vld [vmem:[#allocation5 + $0x4f0] sm:$0xff]
        %v376 = vld [vmem:[#allocation5 + $0x4f8] sm:$0xff]
        %v377 = vld [vmem:[#allocation5 + $0x500] sm:$0xff]
        %v378 = vld [vmem:[#allocation5 + $0x508] sm:$0xff]
        %v379 = vld [vmem:[#allocation5 + $0x510] sm:$0xff]
        %v380 = vld [vmem:[#allocation5 + $0x518] sm:$0xff]
        %v381 = vld [vmem:[#allocation5 + $0x520] sm:$0xff]
        %v382 = vld [vmem:[#allocation5 + $0x528] sm:$0xff]
        %v383 = vld [vmem:[#allocation5 + $0x530] sm:$0xff]
        %v384 = vld [vmem:[#allocation5 + $0x538] sm:$0xff]
        %v385 = vld [vmem:[#allocation5 + $0x540] sm:$0xff]
        %v386 = vld [vmem:[#allocation5 + $0x548] sm:$0xff]
        %v387 = vld [vmem:[#allocation5 + $0x550] sm:$0xff]
        %v388 = vld [vmem:[#allocation5 + $0x558] sm:$0xff]
        %v389 = vld [vmem:[#allocation5 + $0x560] sm:$0xff]
        %v390 = vld [vmem:[#allocation5 + $0x568] sm:$0xff]
        %v391 = vld [vmem:[#allocation5 + $0x570] sm:$0xff]
        %v392 = vld [vmem:[#allocation5 + $0x578] sm:$0xff]
        %v393 = vld [vmem:[#allocation5 + $0x580] sm:$0xff]
        %v394 = vld [vmem:[#allocation5 + $0x588] sm:$0xff]
        %v395 = vld [vmem:[#allocation5 + $0x590] sm:$0xff]
        %v396 = vld [vmem:[#allocation5 + $0x598] sm:$0xff]
        %v397 = vld [vmem:[#allocation5 + $0x5a0] sm:$0xff]
        %v398 = vld [vmem:[#allocation5 + $0x5a8] sm:$0xff]
        %v399 = vld [vmem:[#allocation5 + $0x5b0] sm:$0xff]
        %v400 = vld [vmem:[#allocation5 + $0x5b8] sm:$0xff]
        %v401 = vld [vmem:[#allocation5 + $0x5c0] sm:$0xff]
        %v402 = vld [vmem:[#allocation5 + $0x5c8] sm:$0xff]
        %v403 = vld [vmem:[#allocation5 + $0x5d0] sm:$0xff]
        %v404 = vld [vmem:[#allocation5 + $0x5d8] sm:$0xff]
        %v405 = vld [vmem:[#allocation5 + $0x5e0] sm:$0xff]
        %v406 = vld [vmem:[#allocation5 + $0x5e8] sm:$0xff]
        %v407 = vld [vmem:[#allocation5 + $0x5f0] sm:$0xff]
        %v408 = vld [vmem:[#allocation5 + $0x5f8] sm:$0xff]
        %v409 = vld [vmem:[#allocation5 + $0x600] sm:$0xff]
        %v410 = vld [vmem:[#allocation5 + $0x608] sm:$0xff]
        %v411 = vld [vmem:[#allocation5 + $0x610] sm:$0xff]
        %v412 = vld [vmem:[#allocation5 + $0x618] sm:$0xff]
        %v413 = vld [vmem:[#allocation5 + $0x620] sm:$0xff]
        %v414 = vld [vmem:[#allocation5 + $0x628] sm:$0xff]
        %v415 = vld [vmem:[#allocation5 + $0x630] sm:$0xff]
        %v416 = vld [vmem:[#allocation5 + $0x638] sm:$0xff]
        %v417 = vld [vmem:[#allocation5 + $0x640] sm:$0xff]
        %v418 = vld [vmem:[#allocation5 + $0x648] sm:$0xff]
        %v419 = vld [vmem:[#allocation5 + $0x650] sm:$0xff]
        %v420 = vld [vmem:[#allocation5 + $0x658] sm:$0xff]
        %v421 = vld [vmem:[#allocation5 + $0x660] sm:$0xff]
        %v422 = vld [vmem:[#allocation5 + $0x668] sm:$0xff]
        %v423 = vld [vmem:[#allocation5 + $0x670] sm:$0xff]
        %v424 = vld [vmem:[#allocation5 + $0x678] sm:$0xff]
        %v425 = vld [vmem:[#allocation5 + $0x680] sm:$0xff]
        %v426 = vld [vmem:[#allocation5 + $0x688] sm:$0xff]
        %v427 = vld [vmem:[#allocation5 + $0x690] sm:$0xff]
        %v428 = vld [vmem:[#allocation5 + $0x698] sm:$0xff]
        %v429 = vld [vmem:[#allocation5 + $0x6a0] sm:$0xff]
        %v430 = vld [vmem:[#allocation5 + $0x6a8] sm:$0xff]
        %v431 = vld [vmem:[#allocation5 + $0x6b0] sm:$0xff]
        %v432 = vld [vmem:[#allocation5 + $0x6b8] sm:$0xff]
        %v433 = vld [vmem:[#allocation5 + $0x6c0] sm:$0xff]
        %v434 = vld [vmem:[#allocation5 + $0x6c8] sm:$0xff]
        %v435 = vld [vmem:[#allocation5 + $0x6d0] sm:$0xff]
        %v436 = vld [vmem:[#allocation5 + $0x6d8] sm:$0xff]
        %v437 = vld [vmem:[#allocation5 + $0x6e0] sm:$0xff]
        %v438 = vld [vmem:[#allocation5 + $0x6e8] sm:$0xff]
        %v439 = vld [vmem:[#allocation5 + $0x6f0] sm:$0xff]
        %v440 = vld [vmem:[#allocation5 + $0x6f8] sm:$0xff]
        %v441 = vld [vmem:[#allocation5 + $0x700] sm:$0xff]
        %v442 = vld [vmem:[#allocation5 + $0x708] sm:$0xff]
        %v443 = vld [vmem:[#allocation5 + $0x710] sm:$0xff]
        %v444 = vld [vmem:[#allocation5 + $0x718] sm:$0xff]
        %v445 = vld [vmem:[#allocation5 + $0x720] sm:$0xff]
        %v446 = vld [vmem:[#allocation5 + $0x728] sm:$0xff]
        %v447 = vld [vmem:[#allocation5 + $0x730] sm:$0xff]
        %v448 = vld [vmem:[#allocation5 + $0x738] sm:$0xff]
        %v449 = vld [vmem:[#allocation5 + $0x740] sm:$0xff]
        %v450 = vld [vmem:[#allocation5 + $0x748] sm:$0xff]
        %v451 = vld [vmem:[#allocation5 + $0x750] sm:$0xff]
        %v452 = vld [vmem:[#allocation5 + $0x758] sm:$0xff]
        %v453 = vld [vmem:[#allocation5 + $0x760] sm:$0xff]
        %v454 = vld [vmem:[#allocation5 + $0x768] sm:$0xff]
        %v455 = vld [vmem:[#allocation5 + $0x770] sm:$0xff]
        %v456 = vld [vmem:[#allocation5 + $0x778] sm:$0xff]
        %v457 = vld [vmem:[#allocation5 + $0x780] sm:$0xff]
        %v458 = vld [vmem:[#allocation5 + $0x788] sm:$0xff]
        %v459 = vld [vmem:[#allocation5 + $0x790] sm:$0xff]
        %v460 = vld [vmem:[#allocation5 + $0x798] sm:$0xff]
        %v461 = vld [vmem:[#allocation5 + $0x7a0] sm:$0xff]
        %v462 = vld [vmem:[#allocation5 + $0x7a8] sm:$0xff]
        %v463 = vld [vmem:[#allocation5 + $0x7b0] sm:$0xff]
        %v464 = vld [vmem:[#allocation5 + $0x7b8] sm:$0xff]
        %v465 = vld [vmem:[#allocation5 + $0x7c0] sm:$0xff]
        %v466 = vld [vmem:[#allocation5 + $0x7c8] sm:$0xff]
        %v467 = vld [vmem:[#allocation5 + $0x7d0] sm:$0xff]
        %v468 = vld [vmem:[#allocation5 + $0x7d8] sm:$0xff]
        %v469 = vld [vmem:[#allocation5 + $0x7e0] sm:$0xff]
        %v470 = vld [vmem:[#allocation5 + $0x7e8] sm:$0xff]
        %v471 = vld [vmem:[#allocation5 + $0x7f0] sm:$0xff]
        %v472 = vld [vmem:[#allocation5 + $0x7f8] sm:$0xff]
        %v474 = vunpack.c.l.b16 %v216
        %v475 = vunpack.c.h.b16 %v216
        %v476 = vpack.c.b16 %v474, %v474
        %v477 = vpack.c.b16 %v475, %v475
        %v736 = vunpack.c.l.b16 %v217
        %v737 = vunpack.c.h.b16 %v217
        %v738 = vunpack.c.l.b16 %v218
        %v739 = vunpack.c.h.b16 %v218
        %v740 = vunpack.c.l.b16 %v219
        %v741 = vunpack.c.h.b16 %v219
        %v742 = vunpack.c.l.b16 %v220
        %v743 = vunpack.c.h.b16 %v220
        %v744 = vunpack.c.l.b16 %v221
        %v745 = vunpack.c.h.b16 %v221
        %v746 = vunpack.c.l.b16 %v222
        %v747 = vunpack.c.h.b16 %v222
        %v748 = vunpack.c.l.b16 %v223
        %v749 = vunpack.c.h.b16 %v223
        %v750 = vunpack.c.l.b16 %v224
        %v751 = vunpack.c.h.b16 %v224
        %v752 = vunpack.c.l.b16 %v225
        %v753 = vunpack.c.h.b16 %v225
        %v754 = vunpack.c.l.b16 %v226
        %v755 = vunpack.c.h.b16 %v226
        %v756 = vunpack.c.l.b16 %v227
        %v757 = vunpack.c.h.b16 %v227
        %v758 = vunpack.c.l.b16 %v228
        %v759 = vunpack.c.h.b16 %v228
        %v760 = vunpack.c.l.b16 %v229
        %v761 = vunpack.c.h.b16 %v229
        %v762 = vunpack.c.l.b16 %v230
        %v763 = vunpack.c.h.b16 %v230
        %v764 = vunpack.c.l.b16 %v231
        %v765 = vunpack.c.h.b16 %v231
        %v766 = vunpack.c.l.b16 %v232
        %v767 = vunpack.c.h.b16 %v232
        %v768 = vunpack.c.l.b16 %v233
        %v769 = vunpack.c.h.b16 %v233
        %v770 = vunpack.c.l.b16 %v234
        %v771 = vunpack.c.h.b16 %v234
        %v772 = vunpack.c.l.b16 %v235
        %v773 = vunpack.c.h.b16 %v235
        %v774 = vunpack.c.l.b16 %v236
        %v775 = vunpack.c.h.b16 %v236
        %v776 = vunpack.c.l.b16 %v237
        %v777 = vunpack.c.h.b16 %v237
        %v778 = vunpack.c.l.b16 %v238
        %v779 = vunpack.c.h.b16 %v238
        %v780 = vunpack.c.l.b16 %v239
        %v781 = vunpack.c.h.b16 %v239
        %v782 = vunpack.c.l.b16 %v240
        %v783 = vunpack.c.h.b16 %v240
        %v784 = vunpack.c.l.b16 %v241
        %v785 = vunpack.c.h.b16 %v241
        %v786 = vunpack.c.l.b16 %v242
        %v787 = vunpack.c.h.b16 %v242
        %v788 = vunpack.c.l.b16 %v243
        %v789 = vunpack.c.h.b16 %v243
        %v790 = vunpack.c.l.b16 %v244
        %v791 = vunpack.c.h.b16 %v244
        %v792 = vunpack.c.l.b16 %v245
        %v793 = vunpack.c.h.b16 %v245
        %v794 = vunpack.c.l.b16 %v246
        %v795 = vunpack.c.h.b16 %v246
        %v796 = vunpack.c.l.b16 %v247
        %v797 = vunpack.c.h.b16 %v247
        %v798 = vunpack.c.l.b16 %v248
        %v799 = vunpack.c.h.b16 %v248
        %v800 = vunpack.c.l.b16 %v249
        %v801 = vunpack.c.h.b16 %v249
        %v802 = vunpack.c.l.b16 %v250
        %v803 = vunpack.c.h.b16 %v250
        %v804 = vunpack.c.l.b16 %v251
        %v805 = vunpack.c.h.b16 %v251
        %v806 = vunpack.c.l.b16 %v252
        %v807 = vunpack.c.h.b16 %v252
        %v808 = vunpack.c.l.b16 %v253
        %v809 = vunpack.c.h.b16 %v253
        %v810 = vunpack.c.l.b16 %v254
        %v811 = vunpack.c.h.b16 %v254
        %v812 = vunpack.c.l.b16 %v255
        %v813 = vunpack.c.h.b16 %v255
        %v814 = vunpack.c.l.b16 %v256
        %v815 = vunpack.c.h.b16 %v256
        %v816 = vunpack.c.l.b16 %v257
        %v817 = vunpack.c.h.b16 %v257
        %v818 = vunpack.c.l.b16 %v258
        %v819 = vunpack.c.h.b16 %v258
        %v820 = vunpack.c.l.b16 %v259
        %v821 = vunpack.c.h.b16 %v259
        %v822 = vunpack.c.l.b16 %v260
        %v823 = vunpack.c.h.b16 %v260
        %v824 = vunpack.c.l.b16 %v261
        %v825 = vunpack.c.h.b16 %v261
        %v826 = vunpack.c.l.b16 %v262
        %v827 = vunpack.c.h.b16 %v262
        %v828 = vunpack.c.l.b16 %v263
        %v829 = vunpack.c.h.b16 %v263
        %v830 = vunpack.c.l.b16 %v264
        %v831 = vunpack.c.h.b16 %v264
        %v832 = vunpack.c.l.b16 %v265
        %v833 = vunpack.c.h.b16 %v265
        %v834 = vunpack.c.l.b16 %v266
        %v835 = vunpack.c.h.b16 %v266
        %v836 = vunpack.c.l.b16 %v267
        %v837 = vunpack.c.h.b16 %v267
        %v838 = vunpack.c.l.b16 %v268
        %v839 = vunpack.c.h.b16 %v268
        %v840 = vunpack.c.l.b16 %v269
        %v841 = vunpack.c.h.b16 %v269
        %v842 = vunpack.c.l.b16 %v270
        %v843 = vunpack.c.h.b16 %v270
        %v844 = vunpack.c.l.b16 %v271
        %v845 = vunpack.c.h.b16 %v271
        %v846 = vunpack.c.l.b16 %v272
        %v847 = vunpack.c.h.b16 %v272
        %v848 = vunpack.c.l.b16 %v273
        %v849 = vunpack.c.h.b16 %v273
        %v850 = vunpack.c.l.b16 %v274
        %v851 = vunpack.c.h.b16 %v274
        %v852 = vunpack.c.l.b16 %v275
        %v853 = vunpack.c.h.b16 %v275
        %v854 = vunpack.c.l.b16 %v276
        %v855 = vunpack.c.h.b16 %v276
        %v856 = vunpack.c.l.b16 %v277
        %v857 = vunpack.c.h.b16 %v277
        %v858 = vunpack.c.l.b16 %v278
        %v859 = vunpack.c.h.b16 %v278
        %v860 = vunpack.c.l.b16 %v279
        %v861 = vunpack.c.h.b16 %v279
        %v862 = vunpack.c.l.b16 %v280
        %v863 = vunpack.c.h.b16 %v280
        %v864 = vunpack.c.l.b16 %v281
        %v865 = vunpack.c.h.b16 %v281
        %v866 = vunpack.c.l.b16 %v282
        %v867 = vunpack.c.h.b16 %v282
        %v868 = vunpack.c.l.b16 %v283
        %v869 = vunpack.c.h.b16 %v283
        %v870 = vunpack.c.l.b16 %v284
        %v871 = vunpack.c.h.b16 %v284
        %v872 = vunpack.c.l.b16 %v285
        %v873 = vunpack.c.h.b16 %v285
        %v874 = vunpack.c.l.b16 %v286
        %v875 = vunpack.c.h.b16 %v286
        %v876 = vunpack.c.l.b16 %v287
        %v877 = vunpack.c.h.b16 %v287
        %v878 = vunpack.c.l.b16 %v288
        %v879 = vunpack.c.h.b16 %v288
        %v880 = vunpack.c.l.b16 %v289
        %v881 = vunpack.c.h.b16 %v289
        %v882 = vunpack.c.l.b16 %v290
        %v883 = vunpack.c.h.b16 %v290
        %v884 = vunpack.c.l.b16 %v291
        %v885 = vunpack.c.h.b16 %v291
        %v886 = vunpack.c.l.b16 %v292
        %v887 = vunpack.c.h.b16 %v292
        %v888 = vunpack.c.l.b16 %v293
        %v889 = vunpack.c.h.b16 %v293
        %v890 = vunpack.c.l.b16 %v294
        %v891 = vunpack.c.h.b16 %v294
        %v892 = vunpack.c.l.b16 %v295
        %v893 = vunpack.c.h.b16 %v295
        %v894 = vunpack.c.l.b16 %v296
        %v895 = vunpack.c.h.b16 %v296
        %v896 = vunpack.c.l.b16 %v297
        %v897 = vunpack.c.h.b16 %v297
        %v898 = vunpack.c.l.b16 %v298
        %v899 = vunpack.c.h.b16 %v298
        %v900 = vunpack.c.l.b16 %v299
        %v901 = vunpack.c.h.b16 %v299
        %v902 = vunpack.c.l.b16 %v300
        %v903 = vunpack.c.h.b16 %v300
        %v904 = vunpack.c.l.b16 %v301
        %v905 = vunpack.c.h.b16 %v301
        %v906 = vunpack.c.l.b16 %v302
        %v907 = vunpack.c.h.b16 %v302
        %v908 = vunpack.c.l.b16 %v303
        %v909 = vunpack.c.h.b16 %v303
        %v910 = vunpack.c.l.b16 %v304
        %v911 = vunpack.c.h.b16 %v304
        %v912 = vunpack.c.l.b16 %v305
        %v913 = vunpack.c.h.b16 %v305
        %v914 = vunpack.c.l.b16 %v306
        %v915 = vunpack.c.h.b16 %v306
        %v916 = vunpack.c.l.b16 %v307
        %v917 = vunpack.c.h.b16 %v307
        %v918 = vunpack.c.l.b16 %v308
        %v919 = vunpack.c.h.b16 %v308
        %v920 = vunpack.c.l.b16 %v309
        %v921 = vunpack.c.h.b16 %v309
        %v922 = vunpack.c.l.b16 %v310
        %v923 = vunpack.c.h.b16 %v310
        %v924 = vunpack.c.l.b16 %v311
        %v925 = vunpack.c.h.b16 %v311
        %v926 = vunpack.c.l.b16 %v312
        %v927 = vunpack.c.h.b16 %v312
        %v928 = vunpack.c.l.b16 %v313
        %v929 = vunpack.c.h.b16 %v313
        %v930 = vunpack.c.l.b16 %v314
        %v931 = vunpack.c.h.b16 %v314
        %v932 = vunpack.c.l.b16 %v315
        %v933 = vunpack.c.h.b16 %v315
        %v934 = vunpack.c.l.b16 %v316
        %v935 = vunpack.c.h.b16 %v316
        %v936 = vunpack.c.l.b16 %v317
        %v937 = vunpack.c.h.b16 %v317
        %v938 = vunpack.c.l.b16 %v318
        %v939 = vunpack.c.h.b16 %v318
        %v940 = vunpack.c.l.b16 %v319
        %v941 = vunpack.c.h.b16 %v319
        %v942 = vunpack.c.l.b16 %v320
        %v943 = vunpack.c.h.b16 %v320
        %v944 = vunpack.c.l.b16 %v321
        %v945 = vunpack.c.h.b16 %v321
        %v946 = vunpack.c.l.b16 %v322
        %v947 = vunpack.c.h.b16 %v322
        %v948 = vunpack.c.l.b16 %v323
        %v949 = vunpack.c.h.b16 %v323
        %v950 = vunpack.c.l.b16 %v324
        %v951 = vunpack.c.h.b16 %v324
        %v952 = vunpack.c.l.b16 %v325
        %v953 = vunpack.c.h.b16 %v325
        %v954 = vunpack.c.l.b16 %v326
        %v955 = vunpack.c.h.b16 %v326
        %v956 = vunpack.c.l.b16 %v327
        %v957 = vunpack.c.h.b16 %v327
        %v958 = vunpack.c.l.b16 %v328
        %v959 = vunpack.c.h.b16 %v328
        %v960 = vunpack.c.l.b16 %v329
        %v961 = vunpack.c.h.b16 %v329
        %v962 = vunpack.c.l.b16 %v330
        %v963 = vunpack.c.h.b16 %v330
        %v964 = vunpack.c.l.b16 %v331
        %v965 = vunpack.c.h.b16 %v331
        %v966 = vunpack.c.l.b16 %v332
        %v967 = vunpack.c.h.b16 %v332
        %v968 = vunpack.c.l.b16 %v333
        %v969 = vunpack.c.h.b16 %v333
        %v970 = vunpack.c.l.b16 %v334
        %v971 = vunpack.c.h.b16 %v334
        %v972 = vunpack.c.l.b16 %v335
        %v973 = vunpack.c.h.b16 %v335
        %v974 = vunpack.c.l.b16 %v336
        %v975 = vunpack.c.h.b16 %v336
        %v976 = vunpack.c.l.b16 %v337
        %v977 = vunpack.c.h.b16 %v337
        %v978 = vunpack.c.l.b16 %v338
        %v979 = vunpack.c.h.b16 %v338
        %v980 = vunpack.c.l.b16 %v339
        %v981 = vunpack.c.h.b16 %v339
        %v982 = vunpack.c.l.b16 %v340
        %v983 = vunpack.c.h.b16 %v340
        %v984 = vunpack.c.l.b16 %v341
        %v985 = vunpack.c.h.b16 %v341
        %v986 = vunpack.c.l.b16 %v342
        %v987 = vunpack.c.h.b16 %v342
        %v988 = vunpack.c.l.b16 %v343
        %v989 = vunpack.c.h.b16 %v343
        %v990 = vunpack.c.l.b16 %v344
        %v991 = vunpack.c.h.b16 %v344
        %v992 = vunpack.c.l.b16 %v345
        %v993 = vunpack.c.h.b16 %v345
        %v994 = vunpack.c.l.b16 %v346
        %v995 = vunpack.c.h.b16 %v346
        %v996 = vunpack.c.l.b16 %v347
        %v997 = vunpack.c.h.b16 %v347
        %v998 = vunpack.c.l.b16 %v348
        %v999 = vunpack.c.h.b16 %v348
        %v1000 = vunpack.c.l.b16 %v349
        %v1001 = vunpack.c.h.b16 %v349
        %v1002 = vunpack.c.l.b16 %v350
        %v1003 = vunpack.c.h.b16 %v350
        %v1004 = vunpack.c.l.b16 %v351
        %v1005 = vunpack.c.h.b16 %v351
        %v1006 = vunpack.c.l.b16 %v352
        %v1007 = vunpack.c.h.b16 %v352
        %v1008 = vunpack.c.l.b16 %v353
        %v1009 = vunpack.c.h.b16 %v353
        %v1010 = vunpack.c.l.b16 %v354
        %v1011 = vunpack.c.h.b16 %v354
        %v1012 = vunpack.c.l.b16 %v355
        %v1013 = vunpack.c.h.b16 %v355
        %v1014 = vunpack.c.l.b16 %v356
        %v1015 = vunpack.c.h.b16 %v356
        %v1016 = vunpack.c.l.b16 %v357
        %v1017 = vunpack.c.h.b16 %v357
        %v1018 = vunpack.c.l.b16 %v358
        %v1019 = vunpack.c.h.b16 %v358
        %v1020 = vunpack.c.l.b16 %v359
        %v1021 = vunpack.c.h.b16 %v359
        %v1022 = vunpack.c.l.b16 %v360
        %v1023 = vunpack.c.h.b16 %v360
        %v1024 = vunpack.c.l.b16 %v361
        %v1025 = vunpack.c.h.b16 %v361
        %v1026 = vunpack.c.l.b16 %v362
        %v1027 = vunpack.c.h.b16 %v362
        %v1028 = vunpack.c.l.b16 %v363
        %v1029 = vunpack.c.h.b16 %v363
        %v1030 = vunpack.c.l.b16 %v364
        %v1031 = vunpack.c.h.b16 %v364
        %v1032 = vunpack.c.l.b16 %v365
        %v1033 = vunpack.c.h.b16 %v365
        %v1034 = vunpack.c.l.b16 %v366
        %v1035 = vunpack.c.h.b16 %v366
        %v1036 = vunpack.c.l.b16 %v367
        %v1037 = vunpack.c.h.b16 %v367
        %v1038 = vunpack.c.l.b16 %v368
        %v1039 = vunpack.c.h.b16 %v368
        %v1040 = vunpack.c.l.b16 %v369
        %v1041 = vunpack.c.h.b16 %v369
        %v1042 = vunpack.c.l.b16 %v370
        %v1043 = vunpack.c.h.b16 %v370
        %v1044 = vunpack.c.l.b16 %v371
        %v1045 = vunpack.c.h.b16 %v371
        %v1046 = vunpack.c.l.b16 %v372
        %v1047 = vunpack.c.h.b16 %v372
        %v1048 = vunpack.c.l.b16 %v373
        %v1049 = vunpack.c.h.b16 %v373
        %v1050 = vunpack.c.l.b16 %v374
        %v1051 = vunpack.c.h.b16 %v374
        %v1052 = vunpack.c.l.b16 %v375
        %v1053 = vunpack.c.h.b16 %v375
        %v1054 = vunpack.c.l.b16 %v376
        %v1055 = vunpack.c.h.b16 %v376
        %v1056 = vunpack.c.l.b16 %v377
        %v1057 = vunpack.c.h.b16 %v377
        %v1058 = vunpack.c.l.b16 %v378
        %v1059 = vunpack.c.h.b16 %v378
        %v1060 = vunpack.c.l.b16 %v379
        %v1061 = vunpack.c.h.b16 %v379
        %v1062 = vunpack.c.l.b16 %v380
        %v1063 = vunpack.c.h.b16 %v380
        %v1064 = vunpack.c.l.b16 %v381
        %v1065 = vunpack.c.h.b16 %v381
        %v1066 = vunpack.c.l.b16 %v382
        %v1067 = vunpack.c.h.b16 %v382
        %v1068 = vunpack.c.l.b16 %v383
        %v1069 = vunpack.c.h.b16 %v383
        %v1070 = vunpack.c.l.b16 %v384
        %v1071 = vunpack.c.h.b16 %v384
        %v1072 = vunpack.c.l.b16 %v385
        %v1073 = vunpack.c.h.b16 %v385
        %v1074 = vunpack.c.l.b16 %v386
        %v1075 = vunpack.c.h.b16 %v386
        %v1076 = vunpack.c.l.b16 %v387
        %v1077 = vunpack.c.h.b16 %v387
        %v1078 = vunpack.c.l.b16 %v388
        %v1079 = vunpack.c.h.b16 %v388
        %v1080 = vunpack.c.l.b16 %v389
        %v1081 = vunpack.c.h.b16 %v389
        %v1082 = vunpack.c.l.b16 %v390
        %v1083 = vunpack.c.h.b16 %v390
        %v1084 = vunpack.c.l.b16 %v391
        %v1085 = vunpack.c.h.b16 %v391
        %v1086 = vunpack.c.l.b16 %v392
        %v1087 = vunpack.c.h.b16 %v392
        %v1088 = vunpack.c.l.b16 %v393
        %v1089 = vunpack.c.h.b16 %v393
        %v1090 = vunpack.c.l.b16 %v394
        %v1091 = vunpack.c.h.b16 %v394
        %v1092 = vunpack.c.l.b16 %v395
        %v1093 = vunpack.c.h.b16 %v395
        %v1094 = vunpack.c.l.b16 %v396
        %v1095 = vunpack.c.h.b16 %v396
        %v1096 = vunpack.c.l.b16 %v397
        %v1097 = vunpack.c.h.b16 %v397
        %v1098 = vunpack.c.l.b16 %v398
        %v1099 = vunpack.c.h.b16 %v398
        %v1100 = vunpack.c.l.b16 %v399
        %v1101 = vunpack.c.h.b16 %v399
        %v1102 = vunpack.c.l.b16 %v400
        %v1103 = vunpack.c.h.b16 %v400
        %v1104 = vunpack.c.l.b16 %v401
        %v1105 = vunpack.c.h.b16 %v401
        %v1106 = vunpack.c.l.b16 %v402
        %v1107 = vunpack.c.h.b16 %v402
        %v1108 = vunpack.c.l.b16 %v403
        %v1109 = vunpack.c.h.b16 %v403
        %v1110 = vunpack.c.l.b16 %v404
        %v1111 = vunpack.c.h.b16 %v404
        %v1112 = vunpack.c.l.b16 %v405
        %v1113 = vunpack.c.h.b16 %v405
        %v1114 = vunpack.c.l.b16 %v406
        %v1115 = vunpack.c.h.b16 %v406
        %v1116 = vunpack.c.l.b16 %v407
        %v1117 = vunpack.c.h.b16 %v407
        %v1118 = vunpack.c.l.b16 %v408
        %v1119 = vunpack.c.h.b16 %v408
        %v1120 = vunpack.c.l.b16 %v409
        %v1121 = vunpack.c.h.b16 %v409
        %v1122 = vunpack.c.l.b16 %v410
        %v1123 = vunpack.c.h.b16 %v410
        %v1124 = vunpack.c.l.b16 %v411
        %v1125 = vunpack.c.h.b16 %v411
        %v1126 = vunpack.c.l.b16 %v412
        %v1127 = vunpack.c.h.b16 %v412
        %v1128 = vunpack.c.l.b16 %v413
        %v1129 = vunpack.c.h.b16 %v413
        %v1130 = vunpack.c.l.b16 %v414
        %v1131 = vunpack.c.h.b16 %v414
        %v1132 = vunpack.c.l.b16 %v415
        %v1133 = vunpack.c.h.b16 %v415
        %v1134 = vunpack.c.l.b16 %v416
        %v1135 = vunpack.c.h.b16 %v416
        %v1136 = vunpack.c.l.b16 %v417
        %v1137 = vunpack.c.h.b16 %v417
        %v1138 = vunpack.c.l.b16 %v418
        %v1139 = vunpack.c.h.b16 %v418
        %v1140 = vunpack.c.l.b16 %v419
        %v1141 = vunpack.c.h.b16 %v419
        %v1142 = vunpack.c.l.b16 %v420
        %v1143 = vunpack.c.h.b16 %v420
        %v1144 = vunpack.c.l.b16 %v421
        %v1145 = vunpack.c.h.b16 %v421
        %v1146 = vunpack.c.l.b16 %v422
        %v1147 = vunpack.c.h.b16 %v422
        %v1148 = vunpack.c.l.b16 %v423
        %v1149 = vunpack.c.h.b16 %v423
        %v1150 = vunpack.c.l.b16 %v424
        %v1151 = vunpack.c.h.b16 %v424
        %v1152 = vunpack.c.l.b16 %v425
        %v1153 = vunpack.c.h.b16 %v425
        %v1154 = vunpack.c.l.b16 %v426
        %v1155 = vunpack.c.h.b16 %v426
        %v1156 = vunpack.c.l.b16 %v427
        %v1157 = vunpack.c.h.b16 %v427
        %v1158 = vunpack.c.l.b16 %v428
        %v1159 = vunpack.c.h.b16 %v428
        %v1160 = vunpack.c.l.b16 %v429
        %v1161 = vunpack.c.h.b16 %v429
        %v1162 = vunpack.c.l.b16 %v430
        %v1163 = vunpack.c.h.b16 %v430
        %v1164 = vunpack.c.l.b16 %v431
        %v1165 = vunpack.c.h.b16 %v431
        %v1166 = vunpack.c.l.b16 %v432
        %v1167 = vunpack.c.h.b16 %v432
        %v1168 = vunpack.c.l.b16 %v433
        %v1169 = vunpack.c.h.b16 %v433
        %v1170 = vunpack.c.l.b16 %v434
        %v1171 = vunpack.c.h.b16 %v434
        %v1172 = vunpack.c.l.b16 %v435
        %v1173 = vunpack.c.h.b16 %v435
        %v1174 = vunpack.c.l.b16 %v436
        %v1175 = vunpack.c.h.b16 %v436
        %v1176 = vunpack.c.l.b16 %v437
        %v1177 = vunpack.c.h.b16 %v437
        %v1178 = vunpack.c.l.b16 %v438
        %v1179 = vunpack.c.h.b16 %v438
        %v1180 = vunpack.c.l.b16 %v439
        %v1181 = vunpack.c.h.b16 %v439
        %v1182 = vunpack.c.l.b16 %v440
        %v1183 = vunpack.c.h.b16 %v440
        %v1184 = vunpack.c.l.b16 %v441
        %v1185 = vunpack.c.h.b16 %v441
        %v1186 = vunpack.c.l.b16 %v442
        %v1187 = vunpack.c.h.b16 %v442
        %v1188 = vunpack.c.l.b16 %v443
        %v1189 = vunpack.c.h.b16 %v443
        %v1190 = vunpack.c.l.b16 %v444
        %v1191 = vunpack.c.h.b16 %v444
        %v1192 = vunpack.c.l.b16 %v445
        %v1193 = vunpack.c.h.b16 %v445
        %v1194 = vunpack.c.l.b16 %v446
        %v1195 = vunpack.c.h.b16 %v446
        %v1196 = vunpack.c.l.b16 %v447
        %v1197 = vunpack.c.h.b16 %v447
        %v1198 = vunpack.c.l.b16 %v448
        %v1199 = vunpack.c.h.b16 %v448
        %v1200 = vunpack.c.l.b16 %v449
        %v1201 = vunpack.c.h.b16 %v449
        %v1202 = vunpack.c.l.b16 %v450
        %v1203 = vunpack.c.h.b16 %v450
        %v1204 = vunpack.c.l.b16 %v451
        %v1205 = vunpack.c.h.b16 %v451
        %v1206 = vunpack.c.l.b16 %v452
        %v1207 = vunpack.c.h.b16 %v452
        %v1208 = vunpack.c.l.b16 %v453
        %v1209 = vunpack.c.h.b16 %v453
        %v1210 = vunpack.c.l.b16 %v454
        %v1211 = vunpack.c.h.b16 %v454
        %v1212 = vunpack.c.l.b16 %v455
        %v1213 = vunpack.c.h.b16 %v455
        %v1214 = vunpack.c.l.b16 %v456
        %v1215 = vunpack.c.h.b16 %v456
        %v1216 = vunpack.c.l.b16 %v457
        %v1217 = vunpack.c.h.b16 %v457
        %v1218 = vunpack.c.l.b16 %v458
        %v1219 = vunpack.c.h.b16 %v458
        %v1220 = vunpack.c.l.b16 %v459
        %v1221 = vunpack.c.h.b16 %v459
        %v1222 = vunpack.c.l.b16 %v460
        %v1223 = vunpack.c.h.b16 %v460
        %v1224 = vunpack.c.l.b16 %v461
        %v1225 = vunpack.c.h.b16 %v461
        %v1226 = vunpack.c.l.b16 %v462
        %v1227 = vunpack.c.h.b16 %v462
        %v1228 = vunpack.c.l.b16 %v463
        %v1229 = vunpack.c.h.b16 %v463
        %v1230 = vunpack.c.l.b16 %v464
        %v1231 = vunpack.c.h.b16 %v464
        %v1232 = vunpack.c.l.b16 %v465
        %v1233 = vunpack.c.h.b16 %v465
        %v1234 = vunpack.c.l.b16 %v466
        %v1235 = vunpack.c.h.b16 %v466
        %v1236 = vunpack.c.l.b16 %v467
        %v1237 = vunpack.c.h.b16 %v467
        %v1238 = vunpack.c.l.b16 %v468
        %v1239 = vunpack.c.h.b16 %v468
        %v1240 = vunpack.c.l.b16 %v469
        %v1241 = vunpack.c.h.b16 %v469
        %v1242 = vunpack.c.l.b16 %v470
        %v1243 = vunpack.c.h.b16 %v470
        %v1244 = vunpack.c.l.b16 %v471
        %v1245 = vunpack.c.h.b16 %v471
        %v1246 = vunpack.c.l.b16 %v472
        %v1247 = vunpack.c.h.b16 %v472
        %v1248 = vpack.c.b16 %v752, %v736
        %v1249 = vpack.c.b16 %v753, %v737
        %v1250 = vpack.c.b16 %v754, %v738
        %v1251 = vpack.c.b16 %v755, %v739
        %v1252 = vpack.c.b16 %v756, %v740
        %v1253 = vpack.c.b16 %v757, %v741
        %v1254 = vpack.c.b16 %v758, %v742
        %v1255 = vpack.c.b16 %v759, %v743
        %v1256 = vpack.c.b16 %v760, %v744
        %v1257 = vpack.c.b16 %v761, %v745
        %v1258 = vpack.c.b16 %v762, %v746
        %v1259 = vpack.c.b16 %v763, %v747
        %v1260 = vpack.c.b16 %v764, %v748
        %v1261 = vpack.c.b16 %v765, %v749
        %v1262 = vpack.c.b16 %v766, %v750
        %v1263 = vpack.c.b16 %v767, %v751
        %v1264 = vpack.c.b16 %v784, %v768
        %v1265 = vpack.c.b16 %v785, %v769
        %v1266 = vpack.c.b16 %v786, %v770
        %v1267 = vpack.c.b16 %v787, %v771
        %v1268 = vpack.c.b16 %v788, %v772
        %v1269 = vpack.c.b16 %v789, %v773
        %v1270 = vpack.c.b16 %v790, %v774
        %v1271 = vpack.c.b16 %v791, %v775
        %v1272 = vpack.c.b16 %v792, %v776
        %v1273 = vpack.c.b16 %v793, %v777
        %v1274 = vpack.c.b16 %v794, %v778
        %v1275 = vpack.c.b16 %v795, %v779
        %v1276 = vpack.c.b16 %v796, %v780
        %v1277 = vpack.c.b16 %v797, %v781
        %v1278 = vpack.c.b16 %v798, %v782
        %v1279 = vpack.c.b16 %v799, %v783
        %v1280 = vpack.c.b16 %v816, %v800
        %v1281 = vpack.c.b16 %v817, %v801
        %v1282 = vpack.c.b16 %v818, %v802
        %v1283 = vpack.c.b16 %v819, %v803
        %v1284 = vpack.c.b16 %v820, %v804
        %v1285 = vpack.c.b16 %v821, %v805
        %v1286 = vpack.c.b16 %v822, %v806
        %v1287 = vpack.c.b16 %v823, %v807
        %v1288 = vpack.c.b16 %v824, %v808
        %v1289 = vpack.c.b16 %v825, %v809
        %v1290 = vpack.c.b16 %v826, %v810
        %v1291 = vpack.c.b16 %v827, %v811
        %v1292 = vpack.c.b16 %v828, %v812
        %v1293 = vpack.c.b16 %v829, %v813
        %v1294 = vpack.c.b16 %v830, %v814
        %v1295 = vpack.c.b16 %v831, %v815
        %v1296 = vpack.c.b16 %v848, %v832
        %v1297 = vpack.c.b16 %v849, %v833
        %v1298 = vpack.c.b16 %v850, %v834
        %v1299 = vpack.c.b16 %v851, %v835
        %v1300 = vpack.c.b16 %v852, %v836
        %v1301 = vpack.c.b16 %v853, %v837
        %v1302 = vpack.c.b16 %v854, %v838
        %v1303 = vpack.c.b16 %v855, %v839
        %v1304 = vpack.c.b16 %v856, %v840
        %v1305 = vpack.c.b16 %v857, %v841
        %v1306 = vpack.c.b16 %v858, %v842
        %v1307 = vpack.c.b16 %v859, %v843
        %v1308 = vpack.c.b16 %v860, %v844
        %v1309 = vpack.c.b16 %v861, %v845
        %v1310 = vpack.c.b16 %v862, %v846
        %v1311 = vpack.c.b16 %v863, %v847
        %v1312 = vpack.c.b16 %v880, %v864
        %v1313 = vpack.c.b16 %v881, %v865
        %v1314 = vpack.c.b16 %v882, %v866
        %v1315 = vpack.c.b16 %v883, %v867
        %v1316 = vpack.c.b16 %v884, %v868
        %v1317 = vpack.c.b16 %v885, %v869
        %v1318 = vpack.c.b16 %v886, %v870
        %v1319 = vpack.c.b16 %v887, %v871
        %v1320 = vpack.c.b16 %v888, %v872
        %v1321 = vpack.c.b16 %v889, %v873
        %v1322 = vpack.c.b16 %v890, %v874
        %v1323 = vpack.c.b16 %v891, %v875
        %v1324 = vpack.c.b16 %v892, %v876
        %v1325 = vpack.c.b16 %v893, %v877
        %v1326 = vpack.c.b16 %v894, %v878
        %v1327 = vpack.c.b16 %v895, %v879
        %v1328 = vpack.c.b16 %v912, %v896
        %v1329 = vpack.c.b16 %v913, %v897
        %v1330 = vpack.c.b16 %v914, %v898
        %v1331 = vpack.c.b16 %v915, %v899
        %v1332 = vpack.c.b16 %v916, %v900
        %v1333 = vpack.c.b16 %v917, %v901
        %v1334 = vpack.c.b16 %v918, %v902
        %v1335 = vpack.c.b16 %v919, %v903
        %v1336 = vpack.c.b16 %v920, %v904
        %v1337 = vpack.c.b16 %v921, %v905
        %v1338 = vpack.c.b16 %v922, %v906
        %v1339 = vpack.c.b16 %v923, %v907
        %v1340 = vpack.c.b16 %v924, %v908
        %v1341 = vpack.c.b16 %v925, %v909
        %v1342 = vpack.c.b16 %v926, %v910
        %v1343 = vpack.c.b16 %v927, %v911
        %v1344 = vpack.c.b16 %v944, %v928
        %v1345 = vpack.c.b16 %v945, %v929
        %v1346 = vpack.c.b16 %v946, %v930
        %v1347 = vpack.c.b16 %v947, %v931
        %v1348 = vpack.c.b16 %v948, %v932
        %v1349 = vpack.c.b16 %v949, %v933
        %v1350 = vpack.c.b16 %v950, %v934
        %v1351 = vpack.c.b16 %v951, %v935
        %v1352 = vpack.c.b16 %v952, %v936
        %v1353 = vpack.c.b16 %v953, %v937
        %v1354 = vpack.c.b16 %v954, %v938
        %v1355 = vpack.c.b16 %v955, %v939
        %v1356 = vpack.c.b16 %v956, %v940
        %v1357 = vpack.c.b16 %v957, %v941
        %v1358 = vpack.c.b16 %v958, %v942
        %v1359 = vpack.c.b16 %v959, %v943
        %v1360 = vpack.c.b16 %v976, %v960
        %v1361 = vpack.c.b16 %v977, %v961
        %v1362 = vpack.c.b16 %v978, %v962
        %v1363 = vpack.c.b16 %v979, %v963
        %v1364 = vpack.c.b16 %v980, %v964
        %v1365 = vpack.c.b16 %v981, %v965
        %v1366 = vpack.c.b16 %v982, %v966
        %v1367 = vpack.c.b16 %v983, %v967
        %v1368 = vpack.c.b16 %v984, %v968
        %v1369 = vpack.c.b16 %v985, %v969
        %v1370 = vpack.c.b16 %v986, %v970
        %v1371 = vpack.c.b16 %v987, %v971
        %v1372 = vpack.c.b16 %v988, %v972
        %v1373 = vpack.c.b16 %v989, %v973
        %v1374 = vpack.c.b16 %v990, %v974
        %v1375 = vpack.c.b16 %v991, %v975
        %v1376 = vpack.c.b16 %v1008, %v992
        %v1377 = vpack.c.b16 %v1009, %v993
        %v1378 = vpack.c.b16 %v1010, %v994
        %v1379 = vpack.c.b16 %v1011, %v995
        %v1380 = vpack.c.b16 %v1012, %v996
        %v1381 = vpack.c.b16 %v1013, %v997
        %v1382 = vpack.c.b16 %v1014, %v998
        %v1383 = vpack.c.b16 %v1015, %v999
        %v1384 = vpack.c.b16 %v1016, %v1000
        %v1385 = vpack.c.b16 %v1017, %v1001
        %v1386 = vpack.c.b16 %v1018, %v1002
        %v1387 = vpack.c.b16 %v1019, %v1003
        %v1388 = vpack.c.b16 %v1020, %v1004
        %v1389 = vpack.c.b16 %v1021, %v1005
        %v1390 = vpack.c.b16 %v1022, %v1006
        %v1391 = vpack.c.b16 %v1023, %v1007
        %v1392 = vpack.c.b16 %v1040, %v1024
        %v1393 = vpack.c.b16 %v1041, %v1025
        %v1394 = vpack.c.b16 %v1042, %v1026
        %v1395 = vpack.c.b16 %v1043, %v1027
        %v1396 = vpack.c.b16 %v1044, %v1028
        %v1397 = vpack.c.b16 %v1045, %v1029
        %v1398 = vpack.c.b16 %v1046, %v1030
        %v1399 = vpack.c.b16 %v1047, %v1031
        %v1400 = vpack.c.b16 %v1048, %v1032
        %v1401 = vpack.c.b16 %v1049, %v1033
        %v1402 = vpack.c.b16 %v1050, %v1034
        %v1403 = vpack.c.b16 %v1051, %v1035
        %v1404 = vpack.c.b16 %v1052, %v1036
        %v1405 = vpack.c.b16 %v1053, %v1037
        %v1406 = vpack.c.b16 %v1054, %v1038
        %v1407 = vpack.c.b16 %v1055, %v1039
        %v1408 = vpack.c.b16 %v1072, %v1056
        %v1409 = vpack.c.b16 %v1073, %v1057
        %v1410 = vpack.c.b16 %v1074, %v1058
        %v1411 = vpack.c.b16 %v1075, %v1059
        %v1412 = vpack.c.b16 %v1076, %v1060
        %v1413 = vpack.c.b16 %v1077, %v1061
        %v1414 = vpack.c.b16 %v1078, %v1062
        %v1415 = vpack.c.b16 %v1079, %v1063
        %v1416 = vpack.c.b16 %v1080, %v1064
        %v1417 = vpack.c.b16 %v1081, %v1065
        %v1418 = vpack.c.b16 %v1082, %v1066
        %v1419 = vpack.c.b16 %v1083, %v1067
        %v1420 = vpack.c.b16 %v1084, %v1068
        %v1421 = vpack.c.b16 %v1085, %v1069
        %v1422 = vpack.c.b16 %v1086, %v1070
        %v1423 = vpack.c.b16 %v1087, %v1071
        %v1424 = vpack.c.b16 %v1104, %v1088
        %v1425 = vpack.c.b16 %v1105, %v1089
        %v1426 = vpack.c.b16 %v1106, %v1090
        %v1427 = vpack.c.b16 %v1107, %v1091
        %v1428 = vpack.c.b16 %v1108, %v1092
        %v1429 = vpack.c.b16 %v1109, %v1093
        %v1430 = vpack.c.b16 %v1110, %v1094
        %v1431 = vpack.c.b16 %v1111, %v1095
        %v1432 = vpack.c.b16 %v1112, %v1096
        %v1433 = vpack.c.b16 %v1113, %v1097
        %v1434 = vpack.c.b16 %v1114, %v1098
        %v1435 = vpack.c.b16 %v1115, %v1099
        %v1436 = vpack.c.b16 %v1116, %v1100
        %v1437 = vpack.c.b16 %v1117, %v1101
        %v1438 = vpack.c.b16 %v1118, %v1102
        %v1439 = vpack.c.b16 %v1119, %v1103
        %v1440 = vpack.c.b16 %v1136, %v1120
        %v1441 = vpack.c.b16 %v1137, %v1121
        %v1442 = vpack.c.b16 %v1138, %v1122
        %v1443 = vpack.c.b16 %v1139, %v1123
        %v1444 = vpack.c.b16 %v1140, %v1124
        %v1445 = vpack.c.b16 %v1141, %v1125
        %v1446 = vpack.c.b16 %v1142, %v1126
        %v1447 = vpack.c.b16 %v1143, %v1127
        %v1448 = vpack.c.b16 %v1144, %v1128
        %v1449 = vpack.c.b16 %v1145, %v1129
        %v1450 = vpack.c.b16 %v1146, %v1130
        %v1451 = vpack.c.b16 %v1147, %v1131
        %v1452 = vpack.c.b16 %v1148, %v1132
        %v1453 = vpack.c.b16 %v1149, %v1133
        %v1454 = vpack.c.b16 %v1150, %v1134
        %v1455 = vpack.c.b16 %v1151, %v1135
        %v1456 = vpack.c.b16 %v1168, %v1152
        %v1457 = vpack.c.b16 %v1169, %v1153
        %v1458 = vpack.c.b16 %v1170, %v1154
        %v1459 = vpack.c.b16 %v1171, %v1155
        %v1460 = vpack.c.b16 %v1172, %v1156
        %v1461 = vpack.c.b16 %v1173, %v1157
        %v1462 = vpack.c.b16 %v1174, %v1158
        %v1463 = vpack.c.b16 %v1175, %v1159
        %v1464 = vpack.c.b16 %v1176, %v1160
        %v1465 = vpack.c.b16 %v1177, %v1161
        %v1466 = vpack.c.b16 %v1178, %v1162
        %v1467 = vpack.c.b16 %v1179, %v1163
        %v1468 = vpack.c.b16 %v1180, %v1164
        %v1469 = vpack.c.b16 %v1181, %v1165
        %v1470 = vpack.c.b16 %v1182, %v1166
        %v1471 = vpack.c.b16 %v1183, %v1167
        %v1472 = vpack.c.b16 %v1200, %v1184
        %v1473 = vpack.c.b16 %v1201, %v1185
        %v1474 = vpack.c.b16 %v1202, %v1186
        %v1475 = vpack.c.b16 %v1203, %v1187
        %v1476 = vpack.c.b16 %v1204, %v1188
        %v1477 = vpack.c.b16 %v1205, %v1189
        %v1478 = vpack.c.b16 %v1206, %v1190
        %v1479 = vpack.c.b16 %v1207, %v1191
        %v1480 = vpack.c.b16 %v1208, %v1192
        %v1481 = vpack.c.b16 %v1209, %v1193
        %v1482 = vpack.c.b16 %v1210, %v1194
        %v1483 = vpack.c.b16 %v1211, %v1195
        %v1484 = vpack.c.b16 %v1212, %v1196
        %v1485 = vpack.c.b16 %v1213, %v1197
        %v1486 = vpack.c.b16 %v1214, %v1198
        %v1487 = vpack.c.b16 %v1215, %v1199
        %v1488 = vpack.c.b16 %v1232, %v1216
        %v1489 = vpack.c.b16 %v1233, %v1217
        %v1490 = vpack.c.b16 %v1234, %v1218
        %v1491 = vpack.c.b16 %v1235, %v1219
        %v1492 = vpack.c.b16 %v1236, %v1220
        %v1493 = vpack.c.b16 %v1237, %v1221
        %v1494 = vpack.c.b16 %v1238, %v1222
        %v1495 = vpack.c.b16 %v1239, %v1223
        %v1496 = vpack.c.b16 %v1240, %v1224
        %v1497 = vpack.c.b16 %v1241, %v1225
        %v1498 = vpack.c.b16 %v1242, %v1226
        %v1499 = vpack.c.b16 %v1243, %v1227
        %v1500 = vpack.c.b16 %v1244, %v1228
        %v1501 = vpack.c.b16 %v1245, %v1229
        %v1502 = vpack.c.b16 %v1246, %v1230
        %v1503 = vpack.c.b16 %v1247, %v1231
        %1760 = vmatprep.subr.bf16.mxu0 %v1361
        %1761 = vmatpush1.bf16.msra.mxu0 %v1360
        %1762 = vmatprep.subr.bf16.mxu0 %v1345
        %1763 = vmatpush1.bf16.msra.mxu0 %v1344
        %1764 = vmatprep.subr.bf16.mxu0 %v1329
        %1765 = vmatpush1.bf16.msra.mxu0 %v1328
        %1766 = vmatprep.subr.bf16.mxu0 %v1313
        %1767 = vmatpush1.bf16.msra.mxu0 %v1312
        %1768 = vmatprep.subr.bf16.mxu0 %v1297
        %1769 = vmatpush1.bf16.msra.mxu0 %v1296
        %1770 = vmatprep.subr.bf16.mxu0 %v1281
        %1771 = vmatpush1.bf16.msra.mxu0 %v1280
        %1772 = vmatprep.subr.bf16.mxu0 %v1265
        %1773 = vmatpush1.bf16.msra.mxu0 %v1264
        %1774 = vmatprep.subr.bf16.mxu0 %v1249
        %1775 = vmatpush1.bf16.msra.mxu0 %v1248
        %1776 = vmatprep.subr.bf16.mxu0 %v1489
        %1777 = vmatpush2.bf16.msra.mxu0 %v1488
        %1778 = vmatprep.subr.bf16.mxu0 %v1473
        %1779 = vmatpush2.bf16.msra.mxu0 %v1472
        %1780 = vmatprep.subr.bf16.mxu0 %v1457
        %1781 = vmatpush2.bf16.msra.mxu0 %v1456
        %1782 = vmatprep.subr.bf16.mxu0 %v1441
        %1783 = vmatpush2.bf16.msra.mxu0 %v1440
        %1784 = vmatprep.subr.bf16.mxu0 %v1425
        %1785 = vmatpush2.bf16.msra.mxu0 %v1424
        %1786 = vmatprep.subr.bf16.mxu0 %v1409
        %1787 = vmatpush2.bf16.msra.mxu0 %v1408
        %1788 = vmatprep.subr.bf16.mxu0 %v1393
        %1789 = vmatpush2.bf16.msra.mxu0 %v1392
        %1790 = vmatprep.subr.bf16.mxu0 %v1377
        %1791 = vmatpush2.bf16.msra.mxu0 %v1376
        %1792 = vmatprep.mubr.bf16.mxu0 %v477
        %1793 = vmatmul.mubr.bf16.gmra.mxu0 %v476
        %v1794 = vpop.f32.mrf.mxu0
        %v1795 = vadd.f32 0.0, %v1794
        %v1796 = vpop.f32.mrf.mxu0
        %v1797 = vadd.f32 0.0, %v1796
        %v1798 = vpop.f32.mrf.mxu0
        %v1799 = vpop.f32.mrf.mxu0
        %1800 = vdwg.mxu0
        %1801 = vmatprep.subr.bf16.mxu0 %v1363
        %1802 = vmatpush1.bf16.msra.mxu0 %v1362
        %1803 = vmatprep.subr.bf16.mxu0 %v1347
        %1804 = vmatpush1.bf16.msra.mxu0 %v1346
        %1805 = vmatprep.subr.bf16.mxu0 %v1331
        %1806 = vmatpush1.bf16.msra.mxu0 %v1330
        %1807 = vmatprep.subr.bf16.mxu0 %v1315
        %1808 = vmatpush1.bf16.msra.mxu0 %v1314
        %1809 = vmatprep.subr.bf16.mxu0 %v1299
        %1810 = vmatpush1.bf16.msra.mxu0 %v1298
        %1811 = vmatprep.subr.bf16.mxu0 %v1283
        %1812 = vmatpush1.bf16.msra.mxu0 %v1282
        %1813 = vmatprep.subr.bf16.mxu0 %v1267
        %1814 = vmatpush1.bf16.msra.mxu0 %v1266
        %1815 = vmatprep.subr.bf16.mxu0 %v1251
        %1816 = vmatpush1.bf16.msra.mxu0 %v1250
        %1817 = vmatprep.subr.bf16.mxu0 %v1491
        %1818 = vmatpush2.bf16.msra.mxu0 %v1490
        %1819 = vmatprep.subr.bf16.mxu0 %v1475
        %1820 = vmatpush2.bf16.msra.mxu0 %v1474
        %1821 = vmatprep.subr.bf16.mxu0 %v1459
        %1822 = vmatpush2.bf16.msra.mxu0 %v1458
        %1823 = vmatprep.subr.bf16.mxu0 %v1443
        %1824 = vmatpush2.bf16.msra.mxu0 %v1442
        %1825 = vmatprep.subr.bf16.mxu0 %v1427
        %1826 = vmatpush2.bf16.msra.mxu0 %v1426
        %1827 = vmatprep.subr.bf16.mxu0 %v1411
        %1828 = vmatpush2.bf16.msra.mxu0 %v1410
        %1829 = vmatprep.subr.bf16.mxu0 %v1395
        %1830 = vmatpush2.bf16.msra.mxu0 %v1394
        %1831 = vmatprep.subr.bf16.mxu0 %v1379
        %1832 = vmatpush2.bf16.msra.mxu0 %v1378
        %1833 = vmatprep.mubr.bf16.mxu0 %v477
        %1834 = vmatmul.mubr.bf16.gmra.mxu0 %v476
        %v1835 = vpop.f32.mrf.mxu0
        %v1836 = vadd.f32 0.0, %v1835
        %v1837 = vpop.f32.mrf.mxu0
        %v1838 = vadd.f32 0.0, %v1837
        %v1839 = vpop.f32.mrf.mxu0
        %v1840 = vpop.f32.mrf.mxu0
        %1841 = vdwg.mxu0
        %1842 = vmatprep.subr.bf16.mxu0 %v1365
        %1843 = vmatpush1.bf16.msra.mxu0 %v1364
        %1844 = vmatprep.subr.bf16.mxu0 %v1349
        %1845 = vmatpush1.bf16.msra.mxu0 %v1348
        %1846 = vmatprep.subr.bf16.mxu0 %v1333
        %1847 = vmatpush1.bf16.msra.mxu0 %v1332
        %1848 = vmatprep.subr.bf16.mxu0 %v1317
        %1849 = vmatpush1.bf16.msra.mxu0 %v1316
        %1850 = vmatprep.subr.bf16.mxu0 %v1301
        %1851 = vmatpush1.bf16.msra.mxu0 %v1300
        %1852 = vmatprep.subr.bf16.mxu0 %v1285
        %1853 = vmatpush1.bf16.msra.mxu0 %v1284
        %1854 = vmatprep.subr.bf16.mxu0 %v1269
        %1855 = vmatpush1.bf16.msra.mxu0 %v1268
        %1856 = vmatprep.subr.bf16.mxu0 %v1253
        %1857 = vmatpush1.bf16.msra.mxu0 %v1252
        %1858 = vmatprep.subr.bf16.mxu0 %v1493
        %1859 = vmatpush2.bf16.msra.mxu0 %v1492
        %1860 = vmatprep.subr.bf16.mxu0 %v1477
        %1861 = vmatpush2.bf16.msra.mxu0 %v1476
        %1862 = vmatprep.subr.bf16.mxu0 %v1461
        %1863 = vmatpush2.bf16.msra.mxu0 %v1460
        %1864 = vmatprep.subr.bf16.mxu0 %v1445
        %1865 = vmatpush2.bf16.msra.mxu0 %v1444
        %1866 = vmatprep.subr.bf16.mxu0 %v1429
        %1867 = vmatpush2.bf16.msra.mxu0 %v1428
        %1868 = vmatprep.subr.bf16.mxu0 %v1413
        %1869 = vmatpush2.bf16.msra.mxu0 %v1412
        %1870 = vmatprep.subr.bf16.mxu0 %v1397
        %1871 = vmatpush2.bf16.msra.mxu0 %v1396
        %1872 = vmatprep.subr.bf16.mxu0 %v1381
        %1873 = vmatpush2.bf16.msra.mxu0 %v1380
        %1874 = vmatprep.mubr.bf16.mxu0 %v477
        %1875 = vmatmul.mubr.bf16.gmra.mxu0 %v476
        %v1876 = vpop.f32.mrf.mxu0
        %v1877 = vadd.f32 0.0, %v1876
        %v1878 = vpop.f32.mrf.mxu0
        %v1879 = vadd.f32 0.0, %v1878
        %v1880 = vpop.f32.mrf.mxu0
        %v1881 = vpop.f32.mrf.mxu0
        %1882 = vdwg.mxu0
        %1883 = vmatprep.subr.bf16.mxu0 %v1367
        %1884 = vmatpush1.bf16.msra.mxu0 %v1366
        %1885 = vmatprep.subr.bf16.mxu0 %v1351
        %1886 = vmatpush1.bf16.msra.mxu0 %v1350
        %1887 = vmatprep.subr.bf16.mxu0 %v1335
        %1888 = vmatpush1.bf16.msra.mxu0 %v1334
        %1889 = vmatprep.subr.bf16.mxu0 %v1319
        %1890 = vmatpush1.bf16.msra.mxu0 %v1318
        %1891 = vmatprep.subr.bf16.mxu0 %v1303
        %1892 = vmatpush1.bf16.msra.mxu0 %v1302
        %1893 = vmatprep.subr.bf16.mxu0 %v1287
        %1894 = vmatpush1.bf16.msra.mxu0 %v1286
        %1895 = vmatprep.subr.bf16.mxu0 %v1271
        %1896 = vmatpush1.bf16.msra.mxu0 %v1270
        %1897 = vmatprep.subr.bf16.mxu0 %v1255
        %1898 = vmatpush1.bf16.msra.mxu0 %v1254
        %1899 = vmatprep.subr.bf16.mxu0 %v1495
        %1900 = vmatpush2.bf16.msra.mxu0 %v1494
        %1901 = vmatprep.subr.bf16.mxu0 %v1479
        %1902 = vmatpush2.bf16.msra.mxu0 %v1478
        %1903 = vmatprep.subr.bf16.mxu0 %v1463
        %1904 = vmatpush2.bf16.msra.mxu0 %v1462
        %1905 = vmatprep.subr.bf16.mxu0 %v1447
        %1906 = vmatpush2.bf16.msra.mxu0 %v1446
        %1907 = vmatprep.subr.bf16.mxu0 %v1431
        %1908 = vmatpush2.bf16.msra.mxu0 %v1430
        %1909 = vmatprep.subr.bf16.mxu0 %v1415
        %1910 = vmatpush2.bf16.msra.mxu0 %v1414
        %1911 = vmatprep.subr.bf16.mxu0 %v1399
        %1912 = vmatpush2.bf16.msra.mxu0 %v1398
        %1913 = vmatprep.subr.bf16.mxu0 %v1383
        %1914 = vmatpush2.bf16.msra.mxu0 %v1382
        %1915 = vmatprep.mubr.bf16.mxu0 %v477
        %1916 = vmatmul.mubr.bf16.gmra.mxu0 %v476
        %v1917 = vpop.f32.mrf.mxu0
        %v1918 = vadd.f32 0.0, %v1917
        %v1919 = vpop.f32.mrf.mxu0
        %v1920 = vadd.f32 0.0, %v1919
        %v1921 = vpop.f32.mrf.mxu0
        %v1922 = vpop.f32.mrf.mxu0
        %1923 = vdwg.mxu0
        %1924 = vmatprep.subr.bf16.mxu0 %v1369
        %1925 = vmatpush1.bf16.msra.mxu0 %v1368
        %1926 = vmatprep.subr.bf16.mxu0 %v1353
        %1927 = vmatpush1.bf16.msra.mxu0 %v1352
        %1928 = vmatprep.subr.bf16.mxu0 %v1337
        %1929 = vmatpush1.bf16.msra.mxu0 %v1336
        %1930 = vmatprep.subr.bf16.mxu0 %v1321
        %1931 = vmatpush1.bf16.msra.mxu0 %v1320
        %1932 = vmatprep.subr.bf16.mxu0 %v1305
        %1933 = vmatpush1.bf16.msra.mxu0 %v1304
        %1934 = vmatprep.subr.bf16.mxu0 %v1289
        %1935 = vmatpush1.bf16.msra.mxu0 %v1288
        %1936 = vmatprep.subr.bf16.mxu0 %v1273
        %1937 = vmatpush1.bf16.msra.mxu0 %v1272
        %1938 = vmatprep.subr.bf16.mxu0 %v1257
        %1939 = vmatpush1.bf16.msra.mxu0 %v1256
        %1940 = vmatprep.subr.bf16.mxu0 %v1497
        %1941 = vmatpush2.bf16.msra.mxu0 %v1496
        %1942 = vmatprep.subr.bf16.mxu0 %v1481
        %1943 = vmatpush2.bf16.msra.mxu0 %v1480
        %1944 = vmatprep.subr.bf16.mxu0 %v1465
        %1945 = vmatpush2.bf16.msra.mxu0 %v1464
        %1946 = vmatprep.subr.bf16.mxu0 %v1449
        %1947 = vmatpush2.bf16.msra.mxu0 %v1448
        %1948 = vmatprep.subr.bf16.mxu0 %v1433
        %1949 = vmatpush2.bf16.msra.mxu0 %v1432
        %1950 = vmatprep.subr.bf16.mxu0 %v1417
        %1951 = vmatpush2.bf16.msra.mxu0 %v1416
        %1952 = vmatprep.subr.bf16.mxu0 %v1401
        %1953 = vmatpush2.bf16.msra.mxu0 %v1400
        %1954 = vmatprep.subr.bf16.mxu0 %v1385
        %1955 = vmatpush2.bf16.msra.mxu0 %v1384
        %1956 = vmatprep.mubr.bf16.mxu0 %v477
        %1957 = vmatmul.mubr.bf16.gmra.mxu0 %v476
        %v1958 = vpop.f32.mrf.mxu0
        %v1959 = vadd.f32 0.0, %v1958
        %v1960 = vpop.f32.mrf.mxu0
        %v1961 = vadd.f32 0.0, %v1960
        %v1962 = vpop.f32.mrf.mxu0
        %v1963 = vpop.f32.mrf.mxu0
        %1964 = vdwg.mxu0
        %1965 = vmatprep.subr.bf16.mxu0 %v1371
        %1966 = vmatpush1.bf16.msra.mxu0 %v1370
        %1967 = vmatprep.subr.bf16.mxu0 %v1355
        %1968 = vmatpush1.bf16.msra.mxu0 %v1354
        %1969 = vmatprep.subr.bf16.mxu0 %v1339
        %1970 = vmatpush1.bf16.msra.mxu0 %v1338
        %1971 = vmatprep.subr.bf16.mxu0 %v1323
        %1972 = vmatpush1.bf16.msra.mxu0 %v1322
        %1973 = vmatprep.subr.bf16.mxu0 %v1307
        %1974 = vmatpush1.bf16.msra.mxu0 %v1306
        %1975 = vmatprep.subr.bf16.mxu0 %v1291
        %1976 = vmatpush1.bf16.msra.mxu0 %v1290
        %1977 = vmatprep.subr.bf16.mxu0 %v1275
        %1978 = vmatpush1.bf16.msra.mxu0 %v1274
        %1979 = vmatprep.subr.bf16.mxu0 %v1259
        %1980 = vmatpush1.bf16.msra.mxu0 %v1258
        %1981 = vmatprep.subr.bf16.mxu0 %v1499
        %1982 = vmatpush2.bf16.msra.mxu0 %v1498
        %1983 = vmatprep.subr.bf16.mxu0 %v1483
        %1984 = vmatpush2.bf16.msra.mxu0 %v1482
        %1985 = vmatprep.subr.bf16.mxu0 %v1467
        %1986 = vmatpush2.bf16.msra.mxu0 %v1466
        %1987 = vmatprep.subr.bf16.mxu0 %v1451
        %1988 = vmatpush2.bf16.msra.mxu0 %v1450
        %1989 = vmatprep.subr.bf16.mxu0 %v1435
        %1990 = vmatpush2.bf16.msra.mxu0 %v1434
        %1991 = vmatprep.subr.bf16.mxu0 %v1419
        %1992 = vmatpush2.bf16.msra.mxu0 %v1418
        %1993 = vmatprep.subr.bf16.mxu0 %v1403
        %1994 = vmatpush2.bf16.msra.mxu0 %v1402
        %1995 = vmatprep.subr.bf16.mxu0 %v1387
        %1996 = vmatpush2.bf16.msra.mxu0 %v1386
        %1997 = vmatprep.mubr.bf16.mxu0 %v477
        %1998 = vmatmul.mubr.bf16.gmra.mxu0 %v476
        %v1999 = vpop.f32.mrf.mxu0
        %v2000 = vadd.f32 0.0, %v1999
        %v2001 = vpop.f32.mrf.mxu0
        %v2002 = vadd.f32 0.0, %v2001
        %v2003 = vpop.f32.mrf.mxu0
        %v2004 = vpop.f32.mrf.mxu0
        %2005 = vdwg.mxu0
        %2006 = vmatprep.subr.bf16.mxu0 %v1373
        %2007 = vmatpush1.bf16.msra.mxu0 %v1372
        %2008 = vmatprep.subr.bf16.mxu0 %v1357
        %2009 = vmatpush1.bf16.msra.mxu0 %v1356
        %2010 = vmatprep.subr.bf16.mxu0 %v1341
        %2011 = vmatpush1.bf16.msra.mxu0 %v1340
        %2012 = vmatprep.subr.bf16.mxu0 %v1325
        %2013 = vmatpush1.bf16.msra.mxu0 %v1324
        %2014 = vmatprep.subr.bf16.mxu0 %v1309
        %2015 = vmatpush1.bf16.msra.mxu0 %v1308
        %2016 = vmatprep.subr.bf16.mxu0 %v1293
        %2017 = vmatpush1.bf16.msra.mxu0 %v1292
        %2018 = vmatprep.subr.bf16.mxu0 %v1277
        %2019 = vmatpush1.bf16.msra.mxu0 %v1276
        %2020 = vmatprep.subr.bf16.mxu0 %v1261
        %2021 = vmatpush1.bf16.msra.mxu0 %v1260
        %2022 = vmatprep.subr.bf16.mxu0 %v1501
        %2023 = vmatpush2.bf16.msra.mxu0 %v1500
        %2024 = vmatprep.subr.bf16.mxu0 %v1485
        %2025 = vmatpush2.bf16.msra.mxu0 %v1484
        %2026 = vmatprep.subr.bf16.mxu0 %v1469
        %2027 = vmatpush2.bf16.msra.mxu0 %v1468
        %2028 = vmatprep.subr.bf16.mxu0 %v1453
        %2029 = vmatpush2.bf16.msra.mxu0 %v1452
        %2030 = vmatprep.subr.bf16.mxu0 %v1437
        %2031 = vmatpush2.bf16.msra.mxu0 %v1436
        %2032 = vmatprep.subr.bf16.mxu0 %v1421
        %2033 = vmatpush2.bf16.msra.mxu0 %v1420
        %2034 = vmatprep.subr.bf16.mxu0 %v1405
        %2035 = vmatpush2.bf16.msra.mxu0 %v1404
        %2036 = vmatprep.subr.bf16.mxu0 %v1389
        %2037 = vmatpush2.bf16.msra.mxu0 %v1388
        %2038 = vmatprep.mubr.bf16.mxu0 %v477
        %2039 = vmatmul.mubr.bf16.gmra.mxu0 %v476
        %v2040 = vpop.f32.mrf.mxu0
        %v2041 = vadd.f32 0.0, %v2040
        %v2042 = vpop.f32.mrf.mxu0
        %v2043 = vadd.f32 0.0, %v2042
        %v2044 = vpop.f32.mrf.mxu0
        %v2045 = vpop.f32.mrf.mxu0
        %2046 = vdwg.mxu0
        %2047 = vmatprep.subr.bf16.mxu0 %v1375
        %2048 = vmatpush1.bf16.msra.mxu0 %v1374
        %2049 = vmatprep.subr.bf16.mxu0 %v1359
        %2050 = vmatpush1.bf16.msra.mxu0 %v1358
        %2051 = vmatprep.subr.bf16.mxu0 %v1343
        %2052 = vmatpush1.bf16.msra.mxu0 %v1342
        %2053 = vmatprep.subr.bf16.mxu0 %v1327
        %2054 = vmatpush1.bf16.msra.mxu0 %v1326
        %2055 = vmatprep.subr.bf16.mxu0 %v1311
        %2056 = vmatpush1.bf16.msra.mxu0 %v1310
        %2057 = vmatprep.subr.bf16.mxu0 %v1295
        %2058 = vmatpush1.bf16.msra.mxu0 %v1294
        %2059 = vmatprep.subr.bf16.mxu0 %v1279
        %2060 = vmatpush1.bf16.msra.mxu0 %v1278
        %2061 = vmatprep.subr.bf16.mxu0 %v1263
        %2062 = vmatpush1.bf16.msra.mxu0 %v1262
        %2063 = vmatprep.subr.bf16.mxu0 %v1503
        %2064 = vmatpush2.bf16.msra.mxu0 %v1502
        %2065 = vmatprep.subr.bf16.mxu0 %v1487
        %2066 = vmatpush2.bf16.msra.mxu0 %v1486
        %2067 = vmatprep.subr.bf16.mxu0 %v1471
        %2068 = vmatpush2.bf16.msra.mxu0 %v1470
        %2069 = vmatprep.subr.bf16.mxu0 %v1455
        %2070 = vmatpush2.bf16.msra.mxu0 %v1454
        %2071 = vmatprep.subr.bf16.mxu0 %v1439
        %2072 = vmatpush2.bf16.msra.mxu0 %v1438
        %2073 = vmatprep.subr.bf16.mxu0 %v1423
        %2074 = vmatpush2.bf16.msra.mxu0 %v1422
        %2075 = vmatprep.subr.bf16.mxu0 %v1407
        %2076 = vmatpush2.bf16.msra.mxu0 %v1406
        %2077 = vmatprep.subr.bf16.mxu0 %v1391
        %2078 = vmatpush2.bf16.msra.mxu0 %v1390
        %2079 = vmatprep.mubr.bf16.mxu0 %v477
        %2080 = vmatmul.mubr.bf16.gmra.mxu0 %v476
        %v2081 = vpop.f32.mrf.mxu0
        %v2082 = vadd.f32 0.0, %v2081
        %v2083 = vpop.f32.mrf.mxu0
        %v2084 = vadd.f32 0.0, %v2083
        %v2085 = vpop.f32.mrf.mxu0
        %v2086 = vpop.f32.mrf.mxu0
        %2087 = vdwg.mxu0
        %v2088 = vmul.f32 %v1795, %v1959
        %v2089 = vmul.f32 %v1797, %v1961
        %v2090 = vmul.f32 %v1836, %v2000
        %v2091 = vmul.f32 %v1838, %v2002
        %v2092 = vmul.f32 %v1877, %v2041
        %v2093 = vmul.f32 %v1879, %v2043
        %v2094 = vmul.f32 %v1918, %v2082
        %v2095 = vmul.f32 %v1920, %v2084
        %v2096 = vpack.c.bf16 %v2088, %v2088
        %v2097 = vpack.c.bf16 %v2089, %v2089
        %v2098 = vpack.c.bf16 %v2090, %v2090
        %v2099 = vpack.c.bf16 %v2091, %v2091
        %v2100 = vpack.c.bf16 %v2092, %v2092
        %v2101 = vpack.c.bf16 %v2093, %v2093
        %v2102 = vpack.c.bf16 %v2094, %v2094
        %v2103 = vpack.c.bf16 %v2095, %v2095
        %v2104 = vld [vmem:[#allocation7] sm:$0xff]
        %v2105 = vld [vmem:[#allocation7 + $0x8] sm:$0xff]
        %v2106 = vld [vmem:[#allocation7 + $0x10] sm:$0xff]
        %v2107 = vld [vmem:[#allocation7 + $0x18] sm:$0xff]
        %v2108 = vld [vmem:[#allocation7 + $0x20] sm:$0xff]
        %v2109 = vld [vmem:[#allocation7 + $0x28] sm:$0xff]
        %v2110 = vld [vmem:[#allocation7 + $0x30] sm:$0xff]
        %v2111 = vld [vmem:[#allocation7 + $0x38] sm:$0xff]
        %v2112 = vld [vmem:[#allocation7 + $0x40] sm:$0xff]
        %v2113 = vld [vmem:[#allocation7 + $0x48] sm:$0xff]
        %v2114 = vld [vmem:[#allocation7 + $0x50] sm:$0xff]
        %v2115 = vld [vmem:[#allocation7 + $0x58] sm:$0xff]
        %v2116 = vld [vmem:[#allocation7 + $0x60] sm:$0xff]
        %v2117 = vld [vmem:[#allocation7 + $0x68] sm:$0xff]
        %v2118 = vld [vmem:[#allocation7 + $0x70] sm:$0xff]
        %v2119 = vld [vmem:[#allocation7 + $0x78] sm:$0xff]
        %v2120 = vld [vmem:[#allocation7 + $0x80] sm:$0xff]
        %v2121 = vld [vmem:[#allocation7 + $0x88] sm:$0xff]
        %v2122 = vld [vmem:[#allocation7 + $0x90] sm:$0xff]
        %v2123 = vld [vmem:[#allocation7 + $0x98] sm:$0xff]
        %v2124 = vld [vmem:[#allocation7 + $0xa0] sm:$0xff]
        %v2125 = vld [vmem:[#allocation7 + $0xa8] sm:$0xff]
        %v2126 = vld [vmem:[#allocation7 + $0xb0] sm:$0xff]
        %v2127 = vld [vmem:[#allocation7 + $0xb8] sm:$0xff]
        %v2128 = vld [vmem:[#allocation7 + $0xc0] sm:$0xff]
        %v2129 = vld [vmem:[#allocation7 + $0xc8] sm:$0xff]
        %v2130 = vld [vmem:[#allocation7 + $0xd0] sm:$0xff]
        %v2131 = vld [vmem:[#allocation7 + $0xd8] sm:$0xff]
        %v2132 = vld [vmem:[#allocation7 + $0xe0] sm:$0xff]
        %v2133 = vld [vmem:[#allocation7 + $0xe8] sm:$0xff]
        %v2134 = vld [vmem:[#allocation7 + $0xf0] sm:$0xff]
        %v2135 = vld [vmem:[#allocation7 + $0xf8] sm:$0xff]
        %v2136 = vld [vmem:[#allocation7 + $0x100] sm:$0xff]
        %v2137 = vld [vmem:[#allocation7 + $0x108] sm:$0xff]
        %v2138 = vld [vmem:[#allocation7 + $0x110] sm:$0xff]
        %v2139 = vld [vmem:[#allocation7 + $0x118] sm:$0xff]
        %v2140 = vld [vmem:[#allocation7 + $0x120] sm:$0xff]
        %v2141 = vld [vmem:[#allocation7 + $0x128] sm:$0xff]
        %v2142 = vld [vmem:[#allocation7 + $0x130] sm:$0xff]
        %v2143 = vld [vmem:[#allocation7 + $0x138] sm:$0xff]
        %v2144 = vld [vmem:[#allocation7 + $0x140] sm:$0xff]
        %v2145 = vld [vmem:[#allocation7 + $0x148] sm:$0xff]
        %v2146 = vld [vmem:[#allocation7 + $0x150] sm:$0xff]
        %v2147 = vld [vmem:[#allocation7 + $0x158] sm:$0xff]
        %v2148 = vld [vmem:[#allocation7 + $0x160] sm:$0xff]
        %v2149 = vld [vmem:[#allocation7 + $0x168] sm:$0xff]
        %v2150 = vld [vmem:[#allocation7 + $0x170] sm:$0xff]
        %v2151 = vld [vmem:[#allocation7 + $0x178] sm:$0xff]
        %v2152 = vld [vmem:[#allocation7 + $0x180] sm:$0xff]
        %v2153 = vld [vmem:[#allocation7 + $0x188] sm:$0xff]
        %v2154 = vld [vmem:[#allocation7 + $0x190] sm:$0xff]
        %v2155 = vld [vmem:[#allocation7 + $0x198] sm:$0xff]
        %v2156 = vld [vmem:[#allocation7 + $0x1a0] sm:$0xff]
        %v2157 = vld [vmem:[#allocation7 + $0x1a8] sm:$0xff]
        %v2158 = vld [vmem:[#allocation7 + $0x1b0] sm:$0xff]
        %v2159 = vld [vmem:[#allocation7 + $0x1b8] sm:$0xff]
        %v2160 = vld [vmem:[#allocation7 + $0x1c0] sm:$0xff]
        %v2161 = vld [vmem:[#allocation7 + $0x1c8] sm:$0xff]
        %v2162 = vld [vmem:[#allocation7 + $0x1d0] sm:$0xff]
        %v2163 = vld [vmem:[#allocation7 + $0x1d8] sm:$0xff]
        %v2164 = vld [vmem:[#allocation7 + $0x1e0] sm:$0xff]
        %v2165 = vld [vmem:[#allocation7 + $0x1e8] sm:$0xff]
        %v2166 = vld [vmem:[#allocation7 + $0x1f0] sm:$0xff]
        %v2167 = vld [vmem:[#allocation7 + $0x1f8] sm:$0xff]
        %v2168 = vld [vmem:[#allocation7 + $0x200] sm:$0xff]
        %v2169 = vld [vmem:[#allocation7 + $0x208] sm:$0xff]
        %v2170 = vld [vmem:[#allocation7 + $0x210] sm:$0xff]
        %v2171 = vld [vmem:[#allocation7 + $0x218] sm:$0xff]
        %v2172 = vld [vmem:[#allocation7 + $0x220] sm:$0xff]
        %v2173 = vld [vmem:[#allocation7 + $0x228] sm:$0xff]
        %v2174 = vld [vmem:[#allocation7 + $0x230] sm:$0xff]
        %v2175 = vld [vmem:[#allocation7 + $0x238] sm:$0xff]
        %v2176 = vld [vmem:[#allocation7 + $0x240] sm:$0xff]
        %v2177 = vld [vmem:[#allocation7 + $0x248] sm:$0xff]
        %v2178 = vld [vmem:[#allocation7 + $0x250] sm:$0xff]
        %v2179 = vld [vmem:[#allocation7 + $0x258] sm:$0xff]
        %v2180 = vld [vmem:[#allocation7 + $0x260] sm:$0xff]
        %v2181 = vld [vmem:[#allocation7 + $0x268] sm:$0xff]
        %v2182 = vld [vmem:[#allocation7 + $0x270] sm:$0xff]
        %v2183 = vld [vmem:[#allocation7 + $0x278] sm:$0xff]
        %v2184 = vld [vmem:[#allocation7 + $0x280] sm:$0xff]
        %v2185 = vld [vmem:[#allocation7 + $0x288] sm:$0xff]
        %v2186 = vld [vmem:[#allocation7 + $0x290] sm:$0xff]
        %v2187 = vld [vmem:[#allocation7 + $0x298] sm:$0xff]
        %v2188 = vld [vmem:[#allocation7 + $0x2a0] sm:$0xff]
        %v2189 = vld [vmem:[#allocation7 + $0x2a8] sm:$0xff]
        %v2190 = vld [vmem:[#allocation7 + $0x2b0] sm:$0xff]
        %v2191 = vld [vmem:[#allocation7 + $0x2b8] sm:$0xff]
        %v2192 = vld [vmem:[#allocation7 + $0x2c0] sm:$0xff]
        %v2193 = vld [vmem:[#allocation7 + $0x2c8] sm:$0xff]
        %v2194 = vld [vmem:[#allocation7 + $0x2d0] sm:$0xff]
        %v2195 = vld [vmem:[#allocation7 + $0x2d8] sm:$0xff]
        %v2196 = vld [vmem:[#allocation7 + $0x2e0] sm:$0xff]
        %v2197 = vld [vmem:[#allocation7 + $0x2e8] sm:$0xff]
        %v2198 = vld [vmem:[#allocation7 + $0x2f0] sm:$0xff]
        %v2199 = vld [vmem:[#allocation7 + $0x2f8] sm:$0xff]
        %v2200 = vld [vmem:[#allocation7 + $0x300] sm:$0xff]
        %v2201 = vld [vmem:[#allocation7 + $0x308] sm:$0xff]
        %v2202 = vld [vmem:[#allocation7 + $0x310] sm:$0xff]
        %v2203 = vld [vmem:[#allocation7 + $0x318] sm:$0xff]
        %v2204 = vld [vmem:[#allocation7 + $0x320] sm:$0xff]
        %v2205 = vld [vmem:[#allocation7 + $0x328] sm:$0xff]
        %v2206 = vld [vmem:[#allocation7 + $0x330] sm:$0xff]
        %v2207 = vld [vmem:[#allocation7 + $0x338] sm:$0xff]
        %v2208 = vld [vmem:[#allocation7 + $0x340] sm:$0xff]
        %v2209 = vld [vmem:[#allocation7 + $0x348] sm:$0xff]
        %v2210 = vld [vmem:[#allocation7 + $0x350] sm:$0xff]
        %v2211 = vld [vmem:[#allocation7 + $0x358] sm:$0xff]
        %v2212 = vld [vmem:[#allocation7 + $0x360] sm:$0xff]
        %v2213 = vld [vmem:[#allocation7 + $0x368] sm:$0xff]
        %v2214 = vld [vmem:[#allocation7 + $0x370] sm:$0xff]
        %v2215 = vld [vmem:[#allocation7 + $0x378] sm:$0xff]
        %v2216 = vld [vmem:[#allocation7 + $0x380] sm:$0xff]
        %v2217 = vld [vmem:[#allocation7 + $0x388] sm:$0xff]
        %v2218 = vld [vmem:[#allocation7 + $0x390] sm:$0xff]
        %v2219 = vld [vmem:[#allocation7 + $0x398] sm:$0xff]
        %v2220 = vld [vmem:[#allocation7 + $0x3a0] sm:$0xff]
        %v2221 = vld [vmem:[#allocation7 + $0x3a8] sm:$0xff]
        %v2222 = vld [vmem:[#allocation7 + $0x3b0] sm:$0xff]
        %v2223 = vld [vmem:[#allocation7 + $0x3b8] sm:$0xff]
        %v2224 = vld [vmem:[#allocation7 + $0x3c0] sm:$0xff]
        %v2225 = vld [vmem:[#allocation7 + $0x3c8] sm:$0xff]
        %v2226 = vld [vmem:[#allocation7 + $0x3d0] sm:$0xff]
        %v2227 = vld [vmem:[#allocation7 + $0x3d8] sm:$0xff]
        %v2228 = vld [vmem:[#allocation7 + $0x3e0] sm:$0xff]
        %v2229 = vld [vmem:[#allocation7 + $0x3e8] sm:$0xff]
        %v2230 = vld [vmem:[#allocation7 + $0x3f0] sm:$0xff]
        %v2231 = vld [vmem:[#allocation7 + $0x3f8] sm:$0xff]
        %v2360 = vunpack.c.l.b16 %v2104
        %v2361 = vunpack.c.h.b16 %v2104
        %v2362 = vunpack.c.l.b16 %v2105
        %v2363 = vunpack.c.h.b16 %v2105
        %v2364 = vunpack.c.l.b16 %v2106
        %v2365 = vunpack.c.h.b16 %v2106
        %v2366 = vunpack.c.l.b16 %v2107
        %v2367 = vunpack.c.h.b16 %v2107
        %v2368 = vunpack.c.l.b16 %v2108
        %v2369 = vunpack.c.h.b16 %v2108
        %v2370 = vunpack.c.l.b16 %v2109
        %v2371 = vunpack.c.h.b16 %v2109
        %v2372 = vunpack.c.l.b16 %v2110
        %v2373 = vunpack.c.h.b16 %v2110
        %v2374 = vunpack.c.l.b16 %v2111
        %v2375 = vunpack.c.h.b16 %v2111
        %v2376 = vunpack.c.l.b16 %v2112
        %v2377 = vunpack.c.h.b16 %v2112
        %v2378 = vunpack.c.l.b16 %v2113
        %v2379 = vunpack.c.h.b16 %v2113
        %v2380 = vunpack.c.l.b16 %v2114
        %v2381 = vunpack.c.h.b16 %v2114
        %v2382 = vunpack.c.l.b16 %v2115
        %v2383 = vunpack.c.h.b16 %v2115
        %v2384 = vunpack.c.l.b16 %v2116
        %v2385 = vunpack.c.h.b16 %v2116
        %v2386 = vunpack.c.l.b16 %v2117
        %v2387 = vunpack.c.h.b16 %v2117
        %v2388 = vunpack.c.l.b16 %v2118
        %v2389 = vunpack.c.h.b16 %v2118
        %v2390 = vunpack.c.l.b16 %v2119
        %v2391 = vunpack.c.h.b16 %v2119
        %v2392 = vunpack.c.l.b16 %v2120
        %v2393 = vunpack.c.h.b16 %v2120
        %v2394 = vunpack.c.l.b16 %v2121
        %v2395 = vunpack.c.h.b16 %v2121
        %v2396 = vunpack.c.l.b16 %v2122
        %v2397 = vunpack.c.h.b16 %v2122
        %v2398 = vunpack.c.l.b16 %v2123
        %v2399 = vunpack.c.h.b16 %v2123
        %v2400 = vunpack.c.l.b16 %v2124
        %v2401 = vunpack.c.h.b16 %v2124
        %v2402 = vunpack.c.l.b16 %v2125
        %v2403 = vunpack.c.h.b16 %v2125
        %v2404 = vunpack.c.l.b16 %v2126
        %v2405 = vunpack.c.h.b16 %v2126
        %v2406 = vunpack.c.l.b16 %v2127
        %v2407 = vunpack.c.h.b16 %v2127
        %v2408 = vunpack.c.l.b16 %v2128
        %v2409 = vunpack.c.h.b16 %v2128
        %v2410 = vunpack.c.l.b16 %v2129
        %v2411 = vunpack.c.h.b16 %v2129
        %v2412 = vunpack.c.l.b16 %v2130
        %v2413 = vunpack.c.h.b16 %v2130
        %v2414 = vunpack.c.l.b16 %v2131
        %v2415 = vunpack.c.h.b16 %v2131
        %v2416 = vunpack.c.l.b16 %v2132
        %v2417 = vunpack.c.h.b16 %v2132
        %v2418 = vunpack.c.l.b16 %v2133
        %v2419 = vunpack.c.h.b16 %v2133
        %v2420 = vunpack.c.l.b16 %v2134
        %v2421 = vunpack.c.h.b16 %v2134
        %v2422 = vunpack.c.l.b16 %v2135
        %v2423 = vunpack.c.h.b16 %v2135
        %v2424 = vunpack.c.l.b16 %v2136
        %v2425 = vunpack.c.h.b16 %v2136
        %v2426 = vunpack.c.l.b16 %v2137
        %v2427 = vunpack.c.h.b16 %v2137
        %v2428 = vunpack.c.l.b16 %v2138
        %v2429 = vunpack.c.h.b16 %v2138
        %v2430 = vunpack.c.l.b16 %v2139
        %v2431 = vunpack.c.h.b16 %v2139
        %v2432 = vunpack.c.l.b16 %v2140
        %v2433 = vunpack.c.h.b16 %v2140
        %v2434 = vunpack.c.l.b16 %v2141
        %v2435 = vunpack.c.h.b16 %v2141
        %v2436 = vunpack.c.l.b16 %v2142
        %v2437 = vunpack.c.h.b16 %v2142
        %v2438 = vunpack.c.l.b16 %v2143
        %v2439 = vunpack.c.h.b16 %v2143
        %v2440 = vunpack.c.l.b16 %v2144
        %v2441 = vunpack.c.h.b16 %v2144
        %v2442 = vunpack.c.l.b16 %v2145
        %v2443 = vunpack.c.h.b16 %v2145
        %v2444 = vunpack.c.l.b16 %v2146
        %v2445 = vunpack.c.h.b16 %v2146
        %v2446 = vunpack.c.l.b16 %v2147
        %v2447 = vunpack.c.h.b16 %v2147
        %v2448 = vunpack.c.l.b16 %v2148
        %v2449 = vunpack.c.h.b16 %v2148
        %v2450 = vunpack.c.l.b16 %v2149
        %v2451 = vunpack.c.h.b16 %v2149
        %v2452 = vunpack.c.l.b16 %v2150
        %v2453 = vunpack.c.h.b16 %v2150
        %v2454 = vunpack.c.l.b16 %v2151
        %v2455 = vunpack.c.h.b16 %v2151
        %v2456 = vunpack.c.l.b16 %v2152
        %v2457 = vunpack.c.h.b16 %v2152
        %v2458 = vunpack.c.l.b16 %v2153
        %v2459 = vunpack.c.h.b16 %v2153
        %v2460 = vunpack.c.l.b16 %v2154
        %v2461 = vunpack.c.h.b16 %v2154
        %v2462 = vunpack.c.l.b16 %v2155
        %v2463 = vunpack.c.h.b16 %v2155
        %v2464 = vunpack.c.l.b16 %v2156
        %v2465 = vunpack.c.h.b16 %v2156
        %v2466 = vunpack.c.l.b16 %v2157
        %v2467 = vunpack.c.h.b16 %v2157
        %v2468 = vunpack.c.l.b16 %v2158
        %v2469 = vunpack.c.h.b16 %v2158
        %v2470 = vunpack.c.l.b16 %v2159
        %v2471 = vunpack.c.h.b16 %v2159
        %v2472 = vunpack.c.l.b16 %v2160
        %v2473 = vunpack.c.h.b16 %v2160
        %v2474 = vunpack.c.l.b16 %v2161
        %v2475 = vunpack.c.h.b16 %v2161
        %v2476 = vunpack.c.l.b16 %v2162
        %v2477 = vunpack.c.h.b16 %v2162
        %v2478 = vunpack.c.l.b16 %v2163
        %v2479 = vunpack.c.h.b16 %v2163
        %v2480 = vunpack.c.l.b16 %v2164
        %v2481 = vunpack.c.h.b16 %v2164
        %v2482 = vunpack.c.l.b16 %v2165
        %v2483 = vunpack.c.h.b16 %v2165
        %v2484 = vunpack.c.l.b16 %v2166
        %v2485 = vunpack.c.h.b16 %v2166
        %v2486 = vunpack.c.l.b16 %v2167
        %v2487 = vunpack.c.h.b16 %v2167
        %v2488 = vunpack.c.l.b16 %v2168
        %v2489 = vunpack.c.h.b16 %v2168
        %v2490 = vunpack.c.l.b16 %v2169
        %v2491 = vunpack.c.h.b16 %v2169
        %v2492 = vunpack.c.l.b16 %v2170
        %v2493 = vunpack.c.h.b16 %v2170
        %v2494 = vunpack.c.l.b16 %v2171
        %v2495 = vunpack.c.h.b16 %v2171
        %v2496 = vunpack.c.l.b16 %v2172
        %v2497 = vunpack.c.h.b16 %v2172
        %v2498 = vunpack.c.l.b16 %v2173
        %v2499 = vunpack.c.h.b16 %v2173
        %v2500 = vunpack.c.l.b16 %v2174
        %v2501 = vunpack.c.h.b16 %v2174
        %v2502 = vunpack.c.l.b16 %v2175
        %v2503 = vunpack.c.h.b16 %v2175
        %v2504 = vunpack.c.l.b16 %v2176
        %v2505 = vunpack.c.h.b16 %v2176
        %v2506 = vunpack.c.l.b16 %v2177
        %v2507 = vunpack.c.h.b16 %v2177
        %v2508 = vunpack.c.l.b16 %v2178
        %v2509 = vunpack.c.h.b16 %v2178
        %v2510 = vunpack.c.l.b16 %v2179
        %v2511 = vunpack.c.h.b16 %v2179
        %v2512 = vunpack.c.l.b16 %v2180
        %v2513 = vunpack.c.h.b16 %v2180
        %v2514 = vunpack.c.l.b16 %v2181
        %v2515 = vunpack.c.h.b16 %v2181
        %v2516 = vunpack.c.l.b16 %v2182
        %v2517 = vunpack.c.h.b16 %v2182
        %v2518 = vunpack.c.l.b16 %v2183
        %v2519 = vunpack.c.h.b16 %v2183
        %v2520 = vunpack.c.l.b16 %v2184
        %v2521 = vunpack.c.h.b16 %v2184
        %v2522 = vunpack.c.l.b16 %v2185
        %v2523 = vunpack.c.h.b16 %v2185
        %v2524 = vunpack.c.l.b16 %v2186
        %v2525 = vunpack.c.h.b16 %v2186
        %v2526 = vunpack.c.l.b16 %v2187
        %v2527 = vunpack.c.h.b16 %v2187
        %v2528 = vunpack.c.l.b16 %v2188
        %v2529 = vunpack.c.h.b16 %v2188
        %v2530 = vunpack.c.l.b16 %v2189
        %v2531 = vunpack.c.h.b16 %v2189
        %v2532 = vunpack.c.l.b16 %v2190
        %v2533 = vunpack.c.h.b16 %v2190
        %v2534 = vunpack.c.l.b16 %v2191
        %v2535 = vunpack.c.h.b16 %v2191
        %v2536 = vunpack.c.l.b16 %v2192
        %v2537 = vunpack.c.h.b16 %v2192
        %v2538 = vunpack.c.l.b16 %v2193
        %v2539 = vunpack.c.h.b16 %v2193
        %v2540 = vunpack.c.l.b16 %v2194
        %v2541 = vunpack.c.h.b16 %v2194
        %v2542 = vunpack.c.l.b16 %v2195
        %v2543 = vunpack.c.h.b16 %v2195
        %v2544 = vunpack.c.l.b16 %v2196
        %v2545 = vunpack.c.h.b16 %v2196
        %v2546 = vunpack.c.l.b16 %v2197
        %v2547 = vunpack.c.h.b16 %v2197
        %v2548 = vunpack.c.l.b16 %v2198
        %v2549 = vunpack.c.h.b16 %v2198
        %v2550 = vunpack.c.l.b16 %v2199
        %v2551 = vunpack.c.h.b16 %v2199
        %v2552 = vunpack.c.l.b16 %v2200
        %v2553 = vunpack.c.h.b16 %v2200
        %v2554 = vunpack.c.l.b16 %v2201
        %v2555 = vunpack.c.h.b16 %v2201
        %v2556 = vunpack.c.l.b16 %v2202
        %v2557 = vunpack.c.h.b16 %v2202
        %v2558 = vunpack.c.l.b16 %v2203
        %v2559 = vunpack.c.h.b16 %v2203
        %v2560 = vunpack.c.l.b16 %v2204
        %v2561 = vunpack.c.h.b16 %v2204
        %v2562 = vunpack.c.l.b16 %v2205
        %v2563 = vunpack.c.h.b16 %v2205
        %v2564 = vunpack.c.l.b16 %v2206
        %v2565 = vunpack.c.h.b16 %v2206
        %v2566 = vunpack.c.l.b16 %v2207
        %v2567 = vunpack.c.h.b16 %v2207
        %v2568 = vunpack.c.l.b16 %v2208
        %v2569 = vunpack.c.h.b16 %v2208
        %v2570 = vunpack.c.l.b16 %v2209
        %v2571 = vunpack.c.h.b16 %v2209
        %v2572 = vunpack.c.l.b16 %v2210
        %v2573 = vunpack.c.h.b16 %v2210
        %v2574 = vunpack.c.l.b16 %v2211
        %v2575 = vunpack.c.h.b16 %v2211
        %v2576 = vunpack.c.l.b16 %v2212
        %v2577 = vunpack.c.h.b16 %v2212
        %v2578 = vunpack.c.l.b16 %v2213
        %v2579 = vunpack.c.h.b16 %v2213
        %v2580 = vunpack.c.l.b16 %v2214
        %v2581 = vunpack.c.h.b16 %v2214
        %v2582 = vunpack.c.l.b16 %v2215
        %v2583 = vunpack.c.h.b16 %v2215
        %v2584 = vunpack.c.l.b16 %v2216
        %v2585 = vunpack.c.h.b16 %v2216
        %v2586 = vunpack.c.l.b16 %v2217
        %v2587 = vunpack.c.h.b16 %v2217
        %v2588 = vunpack.c.l.b16 %v2218
        %v2589 = vunpack.c.h.b16 %v2218
        %v2590 = vunpack.c.l.b16 %v2219
        %v2591 = vunpack.c.h.b16 %v2219
        %v2592 = vunpack.c.l.b16 %v2220
        %v2593 = vunpack.c.h.b16 %v2220
        %v2594 = vunpack.c.l.b16 %v2221
        %v2595 = vunpack.c.h.b16 %v2221
        %v2596 = vunpack.c.l.b16 %v2222
        %v2597 = vunpack.c.h.b16 %v2222
        %v2598 = vunpack.c.l.b16 %v2223
        %v2599 = vunpack.c.h.b16 %v2223
        %v2600 = vunpack.c.l.b16 %v2224
        %v2601 = vunpack.c.h.b16 %v2224
        %v2602 = vunpack.c.l.b16 %v2225
        %v2603 = vunpack.c.h.b16 %v2225
        %v2604 = vunpack.c.l.b16 %v2226
        %v2605 = vunpack.c.h.b16 %v2226
        %v2606 = vunpack.c.l.b16 %v2227
        %v2607 = vunpack.c.h.b16 %v2227
        %v2608 = vunpack.c.l.b16 %v2228
        %v2609 = vunpack.c.h.b16 %v2228
        %v2610 = vunpack.c.l.b16 %v2229
        %v2611 = vunpack.c.h.b16 %v2229
        %v2612 = vunpack.c.l.b16 %v2230
        %v2613 = vunpack.c.h.b16 %v2230
        %v2614 = vunpack.c.l.b16 %v2231
        %v2615 = vunpack.c.h.b16 %v2231
        %v2616 = vpack.c.b16 %v2362, %v2360
        %v2617 = vpack.c.b16 %v2363, %v2361
        %v2618 = vpack.c.b16 %v2366, %v2364
        %v2619 = vpack.c.b16 %v2367, %v2365
        %v2620 = vpack.c.b16 %v2370, %v2368
        %v2621 = vpack.c.b16 %v2371, %v2369
        %v2622 = vpack.c.b16 %v2374, %v2372
        %v2623 = vpack.c.b16 %v2375, %v2373
        %v2624 = vpack.c.b16 %v2378, %v2376
        %v2625 = vpack.c.b16 %v2379, %v2377
        %v2626 = vpack.c.b16 %v2382, %v2380
        %v2627 = vpack.c.b16 %v2383, %v2381
        %v2628 = vpack.c.b16 %v2386, %v2384
        %v2629 = vpack.c.b16 %v2387, %v2385
        %v2630 = vpack.c.b16 %v2390, %v2388
        %v2631 = vpack.c.b16 %v2391, %v2389
        %v2632 = vpack.c.b16 %v2394, %v2392
        %v2633 = vpack.c.b16 %v2395, %v2393
        %v2634 = vpack.c.b16 %v2398, %v2396
        %v2635 = vpack.c.b16 %v2399, %v2397
        %v2636 = vpack.c.b16 %v2402, %v2400
        %v2637 = vpack.c.b16 %v2403, %v2401
        %v2638 = vpack.c.b16 %v2406, %v2404
        %v2639 = vpack.c.b16 %v2407, %v2405
        %v2640 = vpack.c.b16 %v2410, %v2408
        %v2641 = vpack.c.b16 %v2411, %v2409
        %v2642 = vpack.c.b16 %v2414, %v2412
        %v2643 = vpack.c.b16 %v2415, %v2413
        %v2644 = vpack.c.b16 %v2418, %v2416
        %v2645 = vpack.c.b16 %v2419, %v2417
        %v2646 = vpack.c.b16 %v2422, %v2420
        %v2647 = vpack.c.b16 %v2423, %v2421
        %v2648 = vpack.c.b16 %v2426, %v2424
        %v2649 = vpack.c.b16 %v2427, %v2425
        %v2650 = vpack.c.b16 %v2430, %v2428
        %v2651 = vpack.c.b16 %v2431, %v2429
        %v2652 = vpack.c.b16 %v2434, %v2432
        %v2653 = vpack.c.b16 %v2435, %v2433
        %v2654 = vpack.c.b16 %v2438, %v2436
        %v2655 = vpack.c.b16 %v2439, %v2437
        %v2656 = vpack.c.b16 %v2442, %v2440
        %v2657 = vpack.c.b16 %v2443, %v2441
        %v2658 = vpack.c.b16 %v2446, %v2444
        %v2659 = vpack.c.b16 %v2447, %v2445
        %v2660 = vpack.c.b16 %v2450, %v2448
        %v2661 = vpack.c.b16 %v2451, %v2449
        %v2662 = vpack.c.b16 %v2454, %v2452
        %v2663 = vpack.c.b16 %v2455, %v2453
        %v2664 = vpack.c.b16 %v2458, %v2456
        %v2665 = vpack.c.b16 %v2459, %v2457
        %v2666 = vpack.c.b16 %v2462, %v2460
        %v2667 = vpack.c.b16 %v2463, %v2461
        %v2668 = vpack.c.b16 %v2466, %v2464
        %v2669 = vpack.c.b16 %v2467, %v2465
        %v2670 = vpack.c.b16 %v2470, %v2468
        %v2671 = vpack.c.b16 %v2471, %v2469
        %v2672 = vpack.c.b16 %v2474, %v2472
        %v2673 = vpack.c.b16 %v2475, %v2473
        %v2674 = vpack.c.b16 %v2478, %v2476
        %v2675 = vpack.c.b16 %v2479, %v2477
        %v2676 = vpack.c.b16 %v2482, %v2480
        %v2677 = vpack.c.b16 %v2483, %v2481
        %v2678 = vpack.c.b16 %v2486, %v2484
        %v2679 = vpack.c.b16 %v2487, %v2485
        %v2680 = vpack.c.b16 %v2490, %v2488
        %v2681 = vpack.c.b16 %v2491, %v2489
        %v2682 = vpack.c.b16 %v2494, %v2492
        %v2683 = vpack.c.b16 %v2495, %v2493
        %v2684 = vpack.c.b16 %v2498, %v2496
        %v2685 = vpack.c.b16 %v2499, %v2497
        %v2686 = vpack.c.b16 %v2502, %v2500
        %v2687 = vpack.c.b16 %v2503, %v2501
        %v2688 = vpack.c.b16 %v2506, %v2504
        %v2689 = vpack.c.b16 %v2507, %v2505
        %v2690 = vpack.c.b16 %v2510, %v2508
        %v2691 = vpack.c.b16 %v2511, %v2509
        %v2692 = vpack.c.b16 %v2514, %v2512
        %v2693 = vpack.c.b16 %v2515, %v2513
        %v2694 = vpack.c.b16 %v2518, %v2516
        %v2695 = vpack.c.b16 %v2519, %v2517
        %v2696 = vpack.c.b16 %v2522, %v2520
        %v2697 = vpack.c.b16 %v2523, %v2521
        %v2698 = vpack.c.b16 %v2526, %v2524
        %v2699 = vpack.c.b16 %v2527, %v2525
        %v2700 = vpack.c.b16 %v2530, %v2528
        %v2701 = vpack.c.b16 %v2531, %v2529
        %v2702 = vpack.c.b16 %v2534, %v2532
        %v2703 = vpack.c.b16 %v2535, %v2533
        %v2704 = vpack.c.b16 %v2538, %v2536
        %v2705 = vpack.c.b16 %v2539, %v2537
        %v2706 = vpack.c.b16 %v2542, %v2540
        %v2707 = vpack.c.b16 %v2543, %v2541
        %v2708 = vpack.c.b16 %v2546, %v2544
        %v2709 = vpack.c.b16 %v2547, %v2545
        %v2710 = vpack.c.b16 %v2550, %v2548
        %v2711 = vpack.c.b16 %v2551, %v2549
        %v2712 = vpack.c.b16 %v2554, %v2552
        %v2713 = vpack.c.b16 %v2555, %v2553
        %v2714 = vpack.c.b16 %v2558, %v2556
        %v2715 = vpack.c.b16 %v2559, %v2557
        %v2716 = vpack.c.b16 %v2562, %v2560
        %v2717 = vpack.c.b16 %v2563, %v2561
        %v2718 = vpack.c.b16 %v2566, %v2564
        %v2719 = vpack.c.b16 %v2567, %v2565
        %v2720 = vpack.c.b16 %v2570, %v2568
        %v2721 = vpack.c.b16 %v2571, %v2569
        %v2722 = vpack.c.b16 %v2574, %v2572
        %v2723 = vpack.c.b16 %v2575, %v2573
        %v2724 = vpack.c.b16 %v2578, %v2576
        %v2725 = vpack.c.b16 %v2579, %v2577
        %v2726 = vpack.c.b16 %v2582, %v2580
        %v2727 = vpack.c.b16 %v2583, %v2581
        %v2728 = vpack.c.b16 %v2586, %v2584
        %v2729 = vpack.c.b16 %v2587, %v2585
        %v2730 = vpack.c.b16 %v2590, %v2588
        %v2731 = vpack.c.b16 %v2591, %v2589
        %v2732 = vpack.c.b16 %v2594, %v2592
        %v2733 = vpack.c.b16 %v2595, %v2593
        %v2734 = vpack.c.b16 %v2598, %v2596
        %v2735 = vpack.c.b16 %v2599, %v2597
        %v2736 = vpack.c.b16 %v2602, %v2600
        %v2737 = vpack.c.b16 %v2603, %v2601
        %v2738 = vpack.c.b16 %v2606, %v2604
        %v2739 = vpack.c.b16 %v2607, %v2605
        %v2740 = vpack.c.b16 %v2610, %v2608
        %v2741 = vpack.c.b16 %v2611, %v2609
        %v2742 = vpack.c.b16 %v2614, %v2612
        %v2743 = vpack.c.b16 %v2615, %v2613
        %2872 = vmatprep.subr.bf16.mxu0 %v2631
        %2873 = vmatpush1.bf16.msra.mxu0 %v2630
        %2874 = vmatprep.subr.bf16.mxu0 %v2629
        %2875 = vmatpush1.bf16.msra.mxu0 %v2628
        %2876 = vmatprep.subr.bf16.mxu0 %v2627
        %2877 = vmatpush1.bf16.msra.mxu0 %v2626
        %2878 = vmatprep.subr.bf16.mxu0 %v2625
        %2879 = vmatpush1.bf16.msra.mxu0 %v2624
        %2880 = vmatprep.subr.bf16.mxu0 %v2623
        %2881 = vmatpush1.bf16.msra.mxu0 %v2622
        %2882 = vmatprep.subr.bf16.mxu0 %v2621
        %2883 = vmatpush1.bf16.msra.mxu0 %v2620
        %2884 = vmatprep.subr.bf16.mxu0 %v2619
        %2885 = vmatpush1.bf16.msra.mxu0 %v2618
        %2886 = vmatprep.subr.bf16.mxu0 %v2617
        %2887 = vmatpush1.bf16.msra.mxu0 %v2616
        %2888 = vmatprep.subr.bf16.mxu0 %v2647
        %2889 = vmatpush2.bf16.msra.mxu0 %v2646
        %2890 = vmatprep.subr.bf16.mxu0 %v2645
        %2891 = vmatpush2.bf16.msra.mxu0 %v2644
        %2892 = vmatprep.subr.bf16.mxu0 %v2643
        %2893 = vmatpush2.bf16.msra.mxu0 %v2642
        %2894 = vmatprep.subr.bf16.mxu0 %v2641
        %2895 = vmatpush2.bf16.msra.mxu0 %v2640
        %2896 = vmatprep.subr.bf16.mxu0 %v2639
        %2897 = vmatpush2.bf16.msra.mxu0 %v2638
        %2898 = vmatprep.subr.bf16.mxu0 %v2637
        %2899 = vmatpush2.bf16.msra.mxu0 %v2636
        %2900 = vmatprep.subr.bf16.mxu0 %v2635
        %2901 = vmatpush2.bf16.msra.mxu0 %v2634
        %2902 = vmatprep.subr.bf16.mxu0 %v2633
        %2903 = vmatpush2.bf16.msra.mxu0 %v2632
        %2904 = vmatprep.mubr.bf16.mxu0 %v2097
        %2905 = vmatmul.mubr.bf16.gmra.mxu0 %v2096
        %v2906 = vpop.f32.mrf.mxu0
        %v2907 = vadd.f32 0.0, %v2906
        %v2908 = vpop.f32.mrf.mxu0
        %v2909 = vadd.f32 0.0, %v2908
        %v2910 = vpop.f32.mrf.mxu0
        %v2911 = vpop.f32.mrf.mxu0
        %2912 = vdwg.mxu0
        %2913 = vmatprep.subr.bf16.mxu0 %v2663
        %2914 = vmatpush1.bf16.msra.mxu0 %v2662
        %2915 = vmatprep.subr.bf16.mxu0 %v2661
        %2916 = vmatpush1.bf16.msra.mxu0 %v2660
        %2917 = vmatprep.subr.bf16.mxu0 %v2659
        %2918 = vmatpush1.bf16.msra.mxu0 %v2658
        %2919 = vmatprep.subr.bf16.mxu0 %v2657
        %2920 = vmatpush1.bf16.msra.mxu0 %v2656
        %2921 = vmatprep.subr.bf16.mxu0 %v2655
        %2922 = vmatpush1.bf16.msra.mxu0 %v2654
        %2923 = vmatprep.subr.bf16.mxu0 %v2653
        %2924 = vmatpush1.bf16.msra.mxu0 %v2652
        %2925 = vmatprep.subr.bf16.mxu0 %v2651
        %2926 = vmatpush1.bf16.msra.mxu0 %v2650
        %2927 = vmatprep.subr.bf16.mxu0 %v2649
        %2928 = vmatpush1.bf16.msra.mxu0 %v2648
        %2929 = vmatprep.subr.bf16.mxu0 %v2679
        %2930 = vmatpush2.bf16.msra.mxu0 %v2678
        %2931 = vmatprep.subr.bf16.mxu0 %v2677
        %2932 = vmatpush2.bf16.msra.mxu0 %v2676
        %2933 = vmatprep.subr.bf16.mxu0 %v2675
        %2934 = vmatpush2.bf16.msra.mxu0 %v2674
        %2935 = vmatprep.subr.bf16.mxu0 %v2673
        %2936 = vmatpush2.bf16.msra.mxu0 %v2672
        %2937 = vmatprep.subr.bf16.mxu0 %v2671
        %2938 = vmatpush2.bf16.msra.mxu0 %v2670
        %2939 = vmatprep.subr.bf16.mxu0 %v2669
        %2940 = vmatpush2.bf16.msra.mxu0 %v2668
        %2941 = vmatprep.subr.bf16.mxu0 %v2667
        %2942 = vmatpush2.bf16.msra.mxu0 %v2666
        %2943 = vmatprep.subr.bf16.mxu0 %v2665
        %2944 = vmatpush2.bf16.msra.mxu0 %v2664
        %2945 = vmatprep.mubr.bf16.mxu0 %v2099
        %2946 = vmatmul.mubr.bf16.gmra.mxu0 %v2098
        %v2947 = vpop.f32.mrf.mxu0
        %v2948 = vadd.f32 %v2907, %v2947
        %v2949 = vpop.f32.mrf.mxu0
        %v2950 = vadd.f32 %v2909, %v2949
        %v2951 = vpop.f32.mrf.mxu0
        %v2952 = vpop.f32.mrf.mxu0
        %2953 = vdwg.mxu0
        %2954 = vmatprep.subr.bf16.mxu0 %v2695
        %2955 = vmatpush1.bf16.msra.mxu0 %v2694
        %2956 = vmatprep.subr.bf16.mxu0 %v2693
        %2957 = vmatpush1.bf16.msra.mxu0 %v2692
        %2958 = vmatprep.subr.bf16.mxu0 %v2691
        %2959 = vmatpush1.bf16.msra.mxu0 %v2690
        %2960 = vmatprep.subr.bf16.mxu0 %v2689
        %2961 = vmatpush1.bf16.msra.mxu0 %v2688
        %2962 = vmatprep.subr.bf16.mxu0 %v2687
        %2963 = vmatpush1.bf16.msra.mxu0 %v2686
        %2964 = vmatprep.subr.bf16.mxu0 %v2685
        %2965 = vmatpush1.bf16.msra.mxu0 %v2684
        %2966 = vmatprep.subr.bf16.mxu0 %v2683
        %2967 = vmatpush1.bf16.msra.mxu0 %v2682
        %2968 = vmatprep.subr.bf16.mxu0 %v2681
        %2969 = vmatpush1.bf16.msra.mxu0 %v2680
        %2970 = vmatprep.subr.bf16.mxu0 %v2711
        %2971 = vmatpush2.bf16.msra.mxu0 %v2710
        %2972 = vmatprep.subr.bf16.mxu0 %v2709
        %2973 = vmatpush2.bf16.msra.mxu0 %v2708
        %2974 = vmatprep.subr.bf16.mxu0 %v2707
        %2975 = vmatpush2.bf16.msra.mxu0 %v2706
        %2976 = vmatprep.subr.bf16.mxu0 %v2705
        %2977 = vmatpush2.bf16.msra.mxu0 %v2704
        %2978 = vmatprep.subr.bf16.mxu0 %v2703
        %2979 = vmatpush2.bf16.msra.mxu0 %v2702
        %2980 = vmatprep.subr.bf16.mxu0 %v2701
        %2981 = vmatpush2.bf16.msra.mxu0 %v2700
        %2982 = vmatprep.subr.bf16.mxu0 %v2699
        %2983 = vmatpush2.bf16.msra.mxu0 %v2698
        %2984 = vmatprep.subr.bf16.mxu0 %v2697
        %2985 = vmatpush2.bf16.msra.mxu0 %v2696
        %2986 = vmatprep.mubr.bf16.mxu0 %v2101
        %2987 = vmatmul.mubr.bf16.gmra.mxu0 %v2100
        %v2988 = vpop.f32.mrf.mxu0
        %v2989 = vadd.f32 %v2948, %v2988
        %v2990 = vpop.f32.mrf.mxu0
        %v2991 = vadd.f32 %v2950, %v2990
        %v2992 = vpop.f32.mrf.mxu0
        %v2993 = vpop.f32.mrf.mxu0
        %2994 = vdwg.mxu0
        %2995 = vmatprep.subr.bf16.mxu0 %v2727
        %2996 = vmatpush1.bf16.msra.mxu0 %v2726
        %2997 = vmatprep.subr.bf16.mxu0 %v2725
        %2998 = vmatpush1.bf16.msra.mxu0 %v2724
        %2999 = vmatprep.subr.bf16.mxu0 %v2723
        %3000 = vmatpush1.bf16.msra.mxu0 %v2722
        %3001 = vmatprep.subr.bf16.mxu0 %v2721
        %3002 = vmatpush1.bf16.msra.mxu0 %v2720
        %3003 = vmatprep.subr.bf16.mxu0 %v2719
        %3004 = vmatpush1.bf16.msra.mxu0 %v2718
        %3005 = vmatprep.subr.bf16.mxu0 %v2717
        %3006 = vmatpush1.bf16.msra.mxu0 %v2716
        %3007 = vmatprep.subr.bf16.mxu0 %v2715
        %3008 = vmatpush1.bf16.msra.mxu0 %v2714
        %3009 = vmatprep.subr.bf16.mxu0 %v2713
        %3010 = vmatpush1.bf16.msra.mxu0 %v2712
        %3011 = vmatprep.subr.bf16.mxu0 %v2743
        %3012 = vmatpush2.bf16.msra.mxu0 %v2742
        %3013 = vmatprep.subr.bf16.mxu0 %v2741
        %3014 = vmatpush2.bf16.msra.mxu0 %v2740
        %3015 = vmatprep.subr.bf16.mxu0 %v2739
        %3016 = vmatpush2.bf16.msra.mxu0 %v2738
        %3017 = vmatprep.subr.bf16.mxu0 %v2737
        %3018 = vmatpush2.bf16.msra.mxu0 %v2736
        %3019 = vmatprep.subr.bf16.mxu0 %v2735
        %3020 = vmatpush2.bf16.msra.mxu0 %v2734
        %3021 = vmatprep.subr.bf16.mxu0 %v2733
        %3022 = vmatpush2.bf16.msra.mxu0 %v2732
        %3023 = vmatprep.subr.bf16.mxu0 %v2731
        %3024 = vmatpush2.bf16.msra.mxu0 %v2730
        %3025 = vmatprep.subr.bf16.mxu0 %v2729
        %3026 = vmatpush2.bf16.msra.mxu0 %v2728
        %3027 = vmatprep.mubr.bf16.mxu0 %v2103
        %3028 = vmatmul.mubr.bf16.gmra.mxu0 %v2102
        %v3029 = vpop.f32.mrf.mxu0
        %v3030 = vadd.f32 %v2989, %v3029
        %v3031 = vpop.f32.mrf.mxu0
        %v3032 = vadd.f32 %v2991, %v3031
        %v3033 = vpop.f32.mrf.mxu0
        %v3034 = vpop.f32.mrf.mxu0
        %3035 = vdwg.mxu0
        %3036 = vst [vmem:[%s215] sm:$0xff] %v3030
        %3037 = vst [vmem:[%s215 + $0x8] sm:$0xff] %v3032
        %s3038 = sand.u32 %s97, 1
        %s3039 = scalar_lea.sflag [#allocation4], %s3038
        %s3040 = sand.u32 %s97, 1
        %s3041 = smul.addr %s3040, 16
        %s3042 = scalar_lea.vmem [#allocation8], %s3041
        // Predicated region
        $region45: #{tpu_custom_call.1} parent=31 // pred_check
          %p3043 = pneg %p107
        $region46: #{tpu_custom_call.1} parent=31 // pred_check_branch
          %3045 = sbr.rel (%p3043) target = $region48
        $region47: #{tpu_custom_call.1} parent=31 // pred_region
          %s3047 = ssub.s32 256, 256
          %3048 = vsyncadd %s3039, %s3047
          %s3049 = smul.addr %s21, 2
          %s3050 = smul.addr %s3049, 128
          %s3051 = scalar_lea.hbm %s3, %s3050
          %s3053 = sshll.u32 %s3042, 4
          %s3054 = int_to_ptr.vmem [resolvable:$true] %s3053
          %3056 = dma.vmem_to_hbm [thread:$0]  %s3054, 256, %s3051, %s3039
        $region48: #{tpu_custom_call.1} parent=31 // pred_fallthru
          _
      $region32: #{tpu_custom_call.1} parent=5 // pred_fallthru
        _
      %p3057 = scmp.le.s32.totalorder 2, %s16
      // Predicated region
      $region49: #{tpu_custom_call.1} parent=5 // pred_check
        %p3058 = pneg %p3057
      $region50: #{tpu_custom_call.1} parent=5 // pred_check_branch
        %3060 = sbr.rel (%p3058) target = $region52
      $region51: #{tpu_custom_call.1} parent=5 // pred_region
        %s3061 = ssub.s32 %s16, 2
        // Predicated region
        $region53: #{tpu_custom_call.1} parent=51 // pred_check
          %p3062 = pneg %p113
        $region54: #{tpu_custom_call.1} parent=51 // pred_check_branch
          %3064 = sbr.rel (%p3062) target = $region56
        $region55: #{tpu_custom_call.1} parent=51 // pred_region
          %s3065 = sand.u32 %s98, 1
          %s3066 = scalar_lea.sflag [#allocation4], %s3065
          %s3067 = sand.u32 %s98, 1
          %s3068 = smul.addr %s3067, 16
          %s3069 = scalar_lea.vmem [#allocation8], %s3068
          %3070 = dma.done %s3066, 256
        $region56: #{tpu_custom_call.1} parent=51 // pred_fallthru
          _
      $region52: #{tpu_custom_call.1} parent=5 // pred_fallthru
        _
    $region6: #{tpu_custom_call.1} parent=1 // loop_footer
      %s20 = sadd.s32 1, %s16
    $region7: #{tpu_custom_call.1} parent=1 // loop_footer_branch
      %15 = sbr.rel target = $region3
    $region8: #{tpu_custom_call.1} parent=1 // loop_exit
      _
    %3071 = vsyncpa [#allocation3], 1
    %s3072 = scalar_lea.sflag [#allocation3], 1
    %3073 = vsyncpa %s3072, 1
    %3074 = vsyncpa [#allocation6], 1
    %3075 = vsyncpa [#allocation4], 1
    %s3076 = scalar_lea.sflag [#allocation4], 1
    %3077 = vsyncpa %s3076, 1

</llo_original>
